<compile_context>
chip_gen: v7x
topology: tpu7x:2x2x1
jax: 0.10.0
libtpu: 0.0.40
codegen_flags: <defaults>
</compile_context>

<pallas_src>
import functools

import jax
import jax.numpy as jnp
from jax.experimental import pallas as pl
from jax.experimental.pallas import tpu as pltpu

FEATURE_CHANNEL = 512


def _self_attention_kernel(x_ref, w_ref, b_ref, o_ref, *, B, N, C):
    """Single grid step over the whole (tiny) problem.

    x_ref : (B*N, C)   bf16 pixels-by-channels, batch folded into rows
    w_ref : (C, 2C)    bf16 fused 1x1-conv weights  [wf | wg | wh] stored as (in, out)
    b_ref : (1, 2C)    f32  fused biases            [bf | bg | bh]
    o_ref : (B, N, C)  f32  output
    """
    Ch = C // 2

    # Fused projection: one wide MXU pass instead of three small ones. f32 accumulation.
    proj = jnp.dot(x_ref[...], w_ref[...],
                   preferred_element_type=jnp.float32) + b_ref[...]        # (B*N, 2C) f32
    proj = proj.reshape(B, N, 2 * C)

    f = proj[:, :, :Ch].astype(jnp.bfloat16)                               # (B, N, C/2)
    g = proj[:, :, Ch:C].astype(jnp.bfloat16)                              # (B, N, C/2)
    h = proj[:, :, C:].astype(jnp.bfloat16)                                # (B, N, C)

    # energy[b, i, j] = <f_i, g_j>  (matches torch.bmm(f^T, g) in NCHW terms).
    # Contraction expressed directly -> no materialized transpose before the MXU.
    energy = jnp.einsum("bic,bjc->bij", f, g,
                        preferred_element_type=jnp.float32)                # (B, N, N) f32

    # Softmax over j, kept in f32 (v5e VPU/EUP have no bf16 path).
    m = jnp.max(energy, axis=-1, keepdims=True)
    p = jnp.exp(energy - m)                                                # (B, N, N) f32
    rowsum = jnp.sum(p, axis=-1, keepdims=True)                            # (B, N, 1)

    # out[b, i, c] = sum_j attn[b, i, j] * h[b, j, c]  (== torch.bmm(h, attn^T) in NCHW).
    # Normalization deferred past the matmul: scale rows by an EUP reciprocal instead of
    # dividing the full (N, N) tile on the VALU.
    out = jnp.einsum("bij,bjc->bic", p.astype(jnp.bfloat16), h,
                     preferred_element_type=jnp.float32)                   # (B, N, C) f32
    out = out * pl.reciprocal(rowsum, approx=True)

    o_ref[...] = out.astype(o_ref.dtype)


def self_attention_pallas(x_nchw, wf, bf, wg, bg, wh, bh):
    """x_nchw: (B, C, H, W) float32. Returns (B, C, H, W) float32."""
    B, C, H, W = x_nchw.shape
    N = H * W

    # NCHW -> (B*N, C): 1x1 conv == per-pixel linear; batch folded into the matmul M dim.
    x_bnc = jnp.transpose(x_nchw.reshape(B, C, N), (0, 2, 1))              # (B, N, C)
    x2d = x_bnc.reshape(B * N, C).astype(jnp.bfloat16)

    # Fuse the three 1x1-conv weight matrices / biases into one slab (bf16 MXU operands,
    # biases stay f32 since they are added after the f32-accumulated matmul).
    w_cat = jnp.concatenate([wf, wg, wh], axis=1).astype(jnp.bfloat16)     # (C, 2C)
    b_cat = jnp.concatenate([bf, bg, bh], axis=0).reshape(1, 2 * C)        # (1, 2C) f32

    kernel = functools.partial(_self_attention_kernel, B=B, N=N, C=C)

    grid_spec = pltpu.PrefetchScalarGridSpec(
        num_scalar_prefetch=0,
        grid=(1,),
        in_specs=[
            pl.BlockSpec((B * N, C), lambda i: (0, 0)),       # x (bf16)
            pl.BlockSpec((C, 2 * C), lambda i: (0, 0)),       # fused weights (bf16)
            pl.BlockSpec((1, 2 * C), lambda i: (0, 0)),       # fused biases (f32)
        ],
        out_specs=pl.BlockSpec((B, N, C), lambda i: (0, 0, 0)),
    )

    out_bnc = pl.pallas_call(
        kernel,
        out_shape=jax.ShapeDtypeStruct((B, N, C), x_nchw.dtype),
        grid_spec=grid_spec,
        compiler_params=pltpu.CompilerParams(dimension_semantics=("arbitrary",)),
    )(x2d, w_cat, b_cat)

    # (B, N, C) -> NCHW
    return jnp.transpose(out_bnc, (0, 2, 1)).reshape(B, C, H, W)


def self_attention_reference(x_nchw, wf, bf, wg, bg, wh, bh):
    """Pure-JAX f32 reference mirroring the PyTorch forward."""
    B, C, H, W = x_nchw.shape
    N = H * W
    x_bnc = jnp.transpose(x_nchw.reshape(B, C, N), (0, 2, 1))              # (B, N, C)
    f = x_bnc @ wf + bf                                                    # (B, N, C/2)
    g = x_bnc @ wg + bg                                                    # (B, N, C/2)
    h = x_bnc @ wh + bh                                                    # (B, N, C)
    energy = jnp.einsum("bic,bjc->bij", f, g)                              # (B, N, N)
    attn = jax.nn.softmax(energy, axis=-1)
    out = jnp.einsum("bij,bjc->bic", attn, h)                              # (B, N, C)
    return jnp.transpose(out, (0, 2, 1)).reshape(B, C, H, W)


if __name__ == "__main__":
    key = jax.random.PRNGKey(0)
    B, C, Hs, Ws = 2, FEATURE_CHANNEL, 8, 8  # small spatial, module-fixed channel count
    Ch = C // 2

    k = jax.random.split(key, 7)
    x = jax.random.normal(k[0], (B, C, Hs, Ws), dtype=jnp.float32)
    # Deterministic synthetic parameters (1x1 convs -> (C_in, C_out) matrices + biases).
    wf = jax.random.normal(k[1], (C, Ch), dtype=jnp.float32) * 0.02
    bf = jax.random.normal(k[2], (Ch,), dtype=jnp.float32) * 0.01
    wg = jax.random.normal(k[3], (C, Ch), dtype=jnp.float32) * 0.02
    bg = jax.random.normal(k[4], (Ch,), dtype=jnp.float32) * 0.01
    wh = jax.random.normal(k[5], (C, C), dtype=jnp.float32) * 0.02
    bh = jax.random.normal(k[6], (C,), dtype=jnp.float32) * 0.01

    out = jax.jit(self_attention_pallas)(x, wf, bf, wg, bg, wh, bh)
    out = jax.block_until_ready(out)

    ref = self_attention_reference(x, wf, bf, wg, bg, wh, bh)
    assert out.shape == x.shape
    # Tolerance loosened vs the pure-f32 version because MXU operands are bf16.
    max_err = float(jnp.max(jnp.abs(out - ref)))
    assert jnp.allclose(out, ref, atol=5e-2, rtol=5e-2), f"max abs err = {max_err}"

    print("KERNEL_OK")
</pallas_src>

<mosaic_0001>
module attributes {stable_mosaic.version = 11 : i64} {
  func.func @_self_attention_kernel(%arg0: i32, %arg1: memref<128x512xbf16, #tpu.memory_space<vmem>>, %arg2: memref<512x1024xbf16, #tpu.memory_space<vmem>>, %arg3: memref<1x1024xf32, #tpu.memory_space<vmem>>, %arg4: memref<2x64x512xf32, #tpu.memory_space<vmem>>) attributes {dimension_semantics = [#tpu.dimension_semantics<arbitrary>], iteration_bounds = array<i64: 1>, scalar_prefetch = 0 : i64, scratch_operands = 0 : i64, tpu.core_type = #tpu.core_type<tc>, window_params = [{pipeline_mode = #tpu.pipeline_mode<synchronous>, transform_indices = @transform_0, window_bounds = array<i64: 128, 512>}, {pipeline_mode = #tpu.pipeline_mode<synchronous>, transform_indices = @transform_1, window_bounds = array<i64: 512, 1024>}, {pipeline_mode = #tpu.pipeline_mode<synchronous>, transform_indices = @transform_2, window_bounds = array<i64: 1, 1024>}, {pipeline_mode = #tpu.pipeline_mode<synchronous>, transform_indices = @transform_3, window_bounds = array<i64: 2, 64, 512>}]} {
    %c0 = arith.constant 0 : index
    %c0_0 = arith.constant 0 : index
    %0 = vector.load %arg1[%c0, %c0_0] : memref<128x512xbf16, #tpu.memory_space<vmem>>, vector<128x512xbf16>
    %c0_1 = arith.constant 0 : index
    %c0_2 = arith.constant 0 : index
    %1 = vector.load %arg2[%c0_1, %c0_2] : memref<512x1024xbf16, #tpu.memory_space<vmem>>, vector<512x1024xbf16>
    %cst = arith.constant dense<0.000000e+00> : vector<128x1024xf32>
    %2 = tpu.matmul %0, %1, %cst {dimension_numbers = #tpu.dot_dimension_numbers<[1], [0], [0], [1], [0, 0, 1, 1], [], []>} : vector<128x512xbf16>, vector<512x1024xbf16>, vector<128x1024xf32> -> vector<128x1024xf32>
    %c0_3 = arith.constant 0 : index
    %c0_4 = arith.constant 0 : index
    %3 = vector.load %arg3[%c0_3, %c0_4] : memref<1x1024xf32, #tpu.memory_space<vmem>>, vector<1x1024xf32>
    %4 = vector.broadcast %3 : vector<1x1024xf32> to vector<128x1024xf32>
    %5 = arith.addf %2, %4 : vector<128x1024xf32>
    %6 = vector.shape_cast %5 : vector<128x1024xf32> to vector<2x64x1024xf32>
    %7 = vector.extract_strided_slice %6 {offsets = [0, 0, 0], sizes = [2, 64, 256], strides = [1, 1, 1]} : vector<2x64x1024xf32> to vector<2x64x256xf32>
    %8 = arith.truncf %7 : vector<2x64x256xf32> to vector<2x64x256xbf16>
    %9 = vector.extract_strided_slice %6 {offsets = [0, 0, 256], sizes = [2, 64, 256], strides = [1, 1, 1]} : vector<2x64x1024xf32> to vector<2x64x256xf32>
    %10 = arith.truncf %9 : vector<2x64x256xf32> to vector<2x64x256xbf16>
    %11 = vector.extract_strided_slice %6 {offsets = [0, 0, 512], sizes = [2, 64, 512], strides = [1, 1, 1]} : vector<2x64x1024xf32> to vector<2x64x512xf32>
    %12 = arith.truncf %11 : vector<2x64x512xf32> to vector<2x64x512xbf16>
    "tpu.trace_start"() <{level = 10 : i32, message = "bic,bjc->bij"}> : () -> ()
    %cst_5 = arith.constant dense<0.000000e+00> : vector<2x64x64xf32>
    %13 = tpu.matmul %8, %10, %cst_5 {dimension_numbers = #tpu.dot_dimension_numbers<[2], [2], [1], [1], [0, 0, 0, 1, 1, 1], [0], [0]>} : vector<2x64x256xbf16>, vector<2x64x256xbf16>, vector<2x64x64xf32> -> vector<2x64x64xf32>
    "tpu.trace_stop"() : () -> ()
    %cst_6 = arith.constant dense<0xFF800000> : vector<2x64xf32>
    %14 = vector.multi_reduction <maximumf>, %13, %cst_6 [2] : vector<2x64x64xf32> to vector<2x64xf32>
    %15 = vector.shape_cast %14 : vector<2x64xf32> to vector<2x64x1xf32>
    %16 = vector.broadcast %15 : vector<2x64x1xf32> to vector<2x64x64xf32>
    %17 = arith.subf %13, %16 : vector<2x64x64xf32>
    %18 = math.exp %17 : vector<2x64x64xf32>
    %cst_7 = arith.constant dense<0.000000e+00> : vector<2x64xf32>
    %19 = vector.multi_reduction <add>, %18, %cst_7 [2] : vector<2x64x64xf32> to vector<2x64xf32>
    %20 = vector.shape_cast %19 : vector<2x64xf32> to vector<2x64x1xf32>
    %21 = arith.truncf %18 : vector<2x64x64xf32> to vector<2x64x64xbf16>
    "tpu.trace_start"() <{level = 10 : i32, message = "bij,bjc->bic"}> : () -> ()
    %cst_8 = arith.constant dense<0.000000e+00> : vector<2x64x512xf32>
    %22 = tpu.matmul %21, %12, %cst_8 {dimension_numbers = #tpu.dot_dimension_numbers<[2], [1], [1], [2], [0, 0, 0, 1, 1, 2], [0], [0]>} : vector<2x64x64xbf16>, vector<2x64x512xbf16>, vector<2x64x512xf32> -> vector<2x64x512xf32>
    "tpu.trace_stop"() : () -> ()
    %23 = tpu.reciprocal %20 {approx = true} : vector<2x64x1xf32> -> vector<2x64x1xf32>
    %24 = vector.broadcast %23 : vector<2x64x1xf32> to vector<2x64x512xf32>
    %25 = arith.mulf %22, %24 : vector<2x64x512xf32>
    %c0_9 = arith.constant 0 : index
    %c0_10 = arith.constant 0 : index
    %c0_11 = arith.constant 0 : index
    %26 = vector.load %arg4[%c0_9, %c0_10, %c0_11] : memref<2x64x512xf32, #tpu.memory_space<vmem>>, vector<2x64x512xf32>
    tpu.vector_store %arg4[%c0_9, %c0_10, %c0_11], %25 {strides = array<i32>} : memref<2x64x512xf32, #tpu.memory_space<vmem>>, vector<2x64x512xf32>,
    return
  }
  func.func @transform_0(%arg0: i32) -> (i32, i32) {
    %c0_i32 = arith.constant 0 : i32
    %c0_i32_0 = arith.constant 0 : i32
    %c0_i32_1 = arith.constant 0 : i32
    return %c0_i32, %c0_i32_0 : i32, i32
  }
  func.func @transform_1(%arg0: i32) -> (i32, i32) {
    %c0_i32 = arith.constant 0 : i32
    %c0_i32_0 = arith.constant 0 : i32
    %c0_i32_1 = arith.constant 0 : i32
    return %c0_i32, %c0_i32_0 : i32, i32
  }
  func.func @transform_2(%arg0: i32) -> (i32, i32) {
    %c0_i32 = arith.constant 0 : i32
    %c0_i32_0 = arith.constant 0 : i32
    %c0_i32_1 = arith.constant 0 : i32
    return %c0_i32, %c0_i32_0 : i32, i32
  }
  func.func @transform_3(%arg0: i32) -> (i32, i32, i32) {
    %c0_i32 = arith.constant 0 : i32
    %c0_i32_0 = arith.constant 0 : i32
    %c0_i32_1 = arith.constant 0 : i32
    %c0_i32_2 = arith.constant 0 : i32
    return %c0_i32, %c0_i32_0, %c0_i32_1 : i32, i32, i32
  }
}

</mosaic_0001>

<llo_original>
// kernel: self_attention_pallas.1
$region0: #{self_attention_pallas.1}
  #allocation0 [shape = 'u32[]', space=smem, size = 0x4, offset = 0x4, fixed_abs, tag = 'smem constant byte address 0x4 - core index']
  #allocation1 [shape = 'u32[144,128]{1,0:T(1,128)}', space=vmem, size = 0x12000, scoped, tag = 'internal scratch']
  %s0 = inlined_call_operand.vmem [shape: bf16[128,512], index: 0, kind: input, shape index: {}]
  %s1 = inlined_call_operand.vmem [shape: bf16[512,1024], index: 1, kind: input, shape index: {}]
  %s2 = inlined_call_operand.vmem [shape: f32[1,1024], index: 2, kind: input, shape index: {}]
  %s3 = inlined_call_operand.hbm [shape: f32[2,64,512], index: 3, kind: output, shape index: {}]
  %s4 = sld [smem:[#allocation0]]
  $region22: #{self_attention_pallas.1} parent=0
    _
  %s6 = ssub.s32 1, %s4
  %s7 = scalar_select 0, %s6, %s4
  $region1: #{self_attention_pallas.1} parent=0
    #allocation2 [shape = 'u8[262144]{0}', space=vmem, size = 0x40000, scoped, tag = 'output window, operand 0, single buffered']
    #allocation3 [shape = 's32[1]{0}', space=sflag, size = 0x4, scoped, tag = 'scoped memory for self_attention_pallas.1']
    %8 = vsyncpa [#allocation3], 0
    // Predicated region
    $region2: #{self_attention_pallas.1} parent=1 // pred_check
      _
    $region3: #{self_attention_pallas.1} parent=1 // pred_check_branch
      %10 = sbr.rel (0) target = $region5
    $region4: #{self_attention_pallas.1} parent=1 // pred_region
      _
    $region5: #{self_attention_pallas.1} parent=1 // pred_fallthru
      _
    // Predicated region
    $region6: #{self_attention_pallas.1} parent=1 // pred_check
      _
    $region7: #{self_attention_pallas.1} parent=1 // pred_check_branch
      %12 = sbr.rel (0) target = $region9
    $region8: #{self_attention_pallas.1} parent=1 // pred_region
      _
    $region9: #{self_attention_pallas.1} parent=1 // pred_fallthru
      _
    // Predicated region
    $region10: #{self_attention_pallas.1} parent=1 // pred_check
      _
    $region11: #{self_attention_pallas.1} parent=1 // pred_check_branch
      %14 = sbr.rel (0) target = $region13
    $region12: #{self_attention_pallas.1} parent=1 // pred_region
      _
    $region13: #{self_attention_pallas.1} parent=1 // pred_fallthru
      _
    %v16 = vld [vmem:[%s0] sm:$0xff]
    %v17 = vld [vmem:[%s0 + $0x8] sm:$0xff]
    %v18 = vld [vmem:[%s0 + $0x10] sm:$0xff]
    %v19 = vld [vmem:[%s0 + $0x18] sm:$0xff]
    %v20 = vld [vmem:[%s0 + $0x20] sm:$0xff]
    %v21 = vld [vmem:[%s0 + $0x28] sm:$0xff]
    %v22 = vld [vmem:[%s0 + $0x30] sm:$0xff]
    %v23 = vld [vmem:[%s0 + $0x38] sm:$0xff]
    %v24 = vld [vmem:[%s0 + $0x40] sm:$0xff]
    %v25 = vld [vmem:[%s0 + $0x48] sm:$0xff]
    %v26 = vld [vmem:[%s0 + $0x50] sm:$0xff]
    %v27 = vld [vmem:[%s0 + $0x58] sm:$0xff]
    %v28 = vld [vmem:[%s0 + $0x60] sm:$0xff]
    %v29 = vld [vmem:[%s0 + $0x68] sm:$0xff]
    %v30 = vld [vmem:[%s0 + $0x70] sm:$0xff]
    %v31 = vld [vmem:[%s0 + $0x78] sm:$0xff]
    %v32 = vld [vmem:[%s0 + $0x80] sm:$0xff]
    %v33 = vld [vmem:[%s0 + $0x88] sm:$0xff]
    %v34 = vld [vmem:[%s0 + $0x90] sm:$0xff]
    %v35 = vld [vmem:[%s0 + $0x98] sm:$0xff]
    %v36 = vld [vmem:[%s0 + $0xa0] sm:$0xff]
    %v37 = vld [vmem:[%s0 + $0xa8] sm:$0xff]
    %v38 = vld [vmem:[%s0 + $0xb0] sm:$0xff]
    %v39 = vld [vmem:[%s0 + $0xb8] sm:$0xff]
    %v40 = vld [vmem:[%s0 + $0xc0] sm:$0xff]
    %v41 = vld [vmem:[%s0 + $0xc8] sm:$0xff]
    %v42 = vld [vmem:[%s0 + $0xd0] sm:$0xff]
    %v43 = vld [vmem:[%s0 + $0xd8] sm:$0xff]
    %v44 = vld [vmem:[%s0 + $0xe0] sm:$0xff]
    %v45 = vld [vmem:[%s0 + $0xe8] sm:$0xff]
    %v46 = vld [vmem:[%s0 + $0xf0] sm:$0xff]
    %v47 = vld [vmem:[%s0 + $0xf8] sm:$0xff]
    %v48 = vld [vmem:[%s1] sm:$0xff]
    %v49 = vld [vmem:[%s1 + $0x8] sm:$0xff]
    %v50 = vld [vmem:[%s1 + $0x10] sm:$0xff]
    %v51 = vld [vmem:[%s1 + $0x18] sm:$0xff]
    %v52 = vld [vmem:[%s1 + $0x20] sm:$0xff]
    %v53 = vld [vmem:[%s1 + $0x28] sm:$0xff]
    %v54 = vld [vmem:[%s1 + $0x30] sm:$0xff]
    %v55 = vld [vmem:[%s1 + $0x38] sm:$0xff]
    %v56 = vld [vmem:[%s1 + $0x40] sm:$0xff]
    %v57 = vld [vmem:[%s1 + $0x48] sm:$0xff]
    %v58 = vld [vmem:[%s1 + $0x50] sm:$0xff]
    %v59 = vld [vmem:[%s1 + $0x58] sm:$0xff]
    %v60 = vld [vmem:[%s1 + $0x60] sm:$0xff]
    %v61 = vld [vmem:[%s1 + $0x68] sm:$0xff]
    %v62 = vld [vmem:[%s1 + $0x70] sm:$0xff]
    %v63 = vld [vmem:[%s1 + $0x78] sm:$0xff]
    %v64 = vld [vmem:[%s1 + $0x80] sm:$0xff]
    %v65 = vld [vmem:[%s1 + $0x88] sm:$0xff]
    %v66 = vld [vmem:[%s1 + $0x90] sm:$0xff]
    %v67 = vld [vmem:[%s1 + $0x98] sm:$0xff]
    %v68 = vld [vmem:[%s1 + $0xa0] sm:$0xff]
    %v69 = vld [vmem:[%s1 + $0xa8] sm:$0xff]
    %v70 = vld [vmem:[%s1 + $0xb0] sm:$0xff]
    %v71 = vld [vmem:[%s1 + $0xb8] sm:$0xff]
    %v72 = vld [vmem:[%s1 + $0xc0] sm:$0xff]
    %v73 = vld [vmem:[%s1 + $0xc8] sm:$0xff]
    %v74 = vld [vmem:[%s1 + $0xd0] sm:$0xff]
    %v75 = vld [vmem:[%s1 + $0xd8] sm:$0xff]
    %v76 = vld [vmem:[%s1 + $0xe0] sm:$0xff]
    %v77 = vld [vmem:[%s1 + $0xe8] sm:$0xff]
    %v78 = vld [vmem:[%s1 + $0xf0] sm:$0xff]
    %v79 = vld [vmem:[%s1 + $0xf8] sm:$0xff]
    %v80 = vld [vmem:[%s1 + $0x100] sm:$0xff]
    %v81 = vld [vmem:[%s1 + $0x108] sm:$0xff]
    %v82 = vld [vmem:[%s1 + $0x110] sm:$0xff]
    %v83 = vld [vmem:[%s1 + $0x118] sm:$0xff]
    %v84 = vld [vmem:[%s1 + $0x120] sm:$0xff]
    %v85 = vld [vmem:[%s1 + $0x128] sm:$0xff]
    %v86 = vld [vmem:[%s1 + $0x130] sm:$0xff]
    %v87 = vld [vmem:[%s1 + $0x138] sm:$0xff]
    %v88 = vld [vmem:[%s1 + $0x140] sm:$0xff]
    %v89 = vld [vmem:[%s1 + $0x148] sm:$0xff]
    %v90 = vld [vmem:[%s1 + $0x150] sm:$0xff]
    %v91 = vld [vmem:[%s1 + $0x158] sm:$0xff]
    %v92 = vld [vmem:[%s1 + $0x160] sm:$0xff]
    %v93 = vld [vmem:[%s1 + $0x168] sm:$0xff]
    %v94 = vld [vmem:[%s1 + $0x170] sm:$0xff]
    %v95 = vld [vmem:[%s1 + $0x178] sm:$0xff]
    %v96 = vld [vmem:[%s1 + $0x180] sm:$0xff]
    %v97 = vld [vmem:[%s1 + $0x188] sm:$0xff]
    %v98 = vld [vmem:[%s1 + $0x190] sm:$0xff]
    %v99 = vld [vmem:[%s1 + $0x198] sm:$0xff]
    %v100 = vld [vmem:[%s1 + $0x1a0] sm:$0xff]
    %v101 = vld [vmem:[%s1 + $0x1a8] sm:$0xff]
    %v102 = vld [vmem:[%s1 + $0x1b0] sm:$0xff]
    %v103 = vld [vmem:[%s1 + $0x1b8] sm:$0xff]
    %v104 = vld [vmem:[%s1 + $0x1c0] sm:$0xff]
    %v105 = vld [vmem:[%s1 + $0x1c8] sm:$0xff]
    %v106 = vld [vmem:[%s1 + $0x1d0] sm:$0xff]
    %v107 = vld [vmem:[%s1 + $0x1d8] sm:$0xff]
    %v108 = vld [vmem:[%s1 + $0x1e0] sm:$0xff]
    %v109 = vld [vmem:[%s1 + $0x1e8] sm:$0xff]
    %v110 = vld [vmem:[%s1 + $0x1f0] sm:$0xff]
    %v111 = vld [vmem:[%s1 + $0x1f8] sm:$0xff]
    %v112 = vld [vmem:[%s1 + $0x200] sm:$0xff]
    %v113 = vld [vmem:[%s1 + $0x208] sm:$0xff]
    %v114 = vld [vmem:[%s1 + $0x210] sm:$0xff]
    %v115 = vld [vmem:[%s1 + $0x218] sm:$0xff]
    %v116 = vld [vmem:[%s1 + $0x220] sm:$0xff]
    %v117 = vld [vmem:[%s1 + $0x228] sm:$0xff]
    %v118 = vld [vmem:[%s1 + $0x230] sm:$0xff]
    %v119 = vld [vmem:[%s1 + $0x238] sm:$0xff]
    %v120 = vld [vmem:[%s1 + $0x240] sm:$0xff]
    %v121 = vld [vmem:[%s1 + $0x248] sm:$0xff]
    %v122 = vld [vmem:[%s1 + $0x250] sm:$0xff]
    %v123 = vld [vmem:[%s1 + $0x258] sm:$0xff]
    %v124 = vld [vmem:[%s1 + $0x260] sm:$0xff]
    %v125 = vld [vmem:[%s1 + $0x268] sm:$0xff]
    %v126 = vld [vmem:[%s1 + $0x270] sm:$0xff]
    %v127 = vld [vmem:[%s1 + $0x278] sm:$0xff]
    %v128 = vld [vmem:[%s1 + $0x280] sm:$0xff]
    %v129 = vld [vmem:[%s1 + $0x288] sm:$0xff]
    %v130 = vld [vmem:[%s1 + $0x290] sm:$0xff]
    %v131 = vld [vmem:[%s1 + $0x298] sm:$0xff]
    %v132 = vld [vmem:[%s1 + $0x2a0] sm:$0xff]
    %v133 = vld [vmem:[%s1 + $0x2a8] sm:$0xff]
    %v134 = vld [vmem:[%s1 + $0x2b0] sm:$0xff]
    %v135 = vld [vmem:[%s1 + $0x2b8] sm:$0xff]
    %v136 = vld [vmem:[%s1 + $0x2c0] sm:$0xff]
    %v137 = vld [vmem:[%s1 + $0x2c8] sm:$0xff]
    %v138 = vld [vmem:[%s1 + $0x2d0] sm:$0xff]
    %v139 = vld [vmem:[%s1 + $0x2d8] sm:$0xff]
    %v140 = vld [vmem:[%s1 + $0x2e0] sm:$0xff]
    %v141 = vld [vmem:[%s1 + $0x2e8] sm:$0xff]
    %v142 = vld [vmem:[%s1 + $0x2f0] sm:$0xff]
    %v143 = vld [vmem:[%s1 + $0x2f8] sm:$0xff]
    %v144 = vld [vmem:[%s1 + $0x300] sm:$0xff]
    %v145 = vld [vmem:[%s1 + $0x308] sm:$0xff]
    %v146 = vld [vmem:[%s1 + $0x310] sm:$0xff]
    %v147 = vld [vmem:[%s1 + $0x318] sm:$0xff]
    %v148 = vld [vmem:[%s1 + $0x320] sm:$0xff]
    %v149 = vld [vmem:[%s1 + $0x328] sm:$0xff]
    %v150 = vld [vmem:[%s1 + $0x330] sm:$0xff]
    %v151 = vld [vmem:[%s1 + $0x338] sm:$0xff]
    %v152 = vld [vmem:[%s1 + $0x340] sm:$0xff]
    %v153 = vld [vmem:[%s1 + $0x348] sm:$0xff]
    %v154 = vld [vmem:[%s1 + $0x350] sm:$0xff]
    %v155 = vld [vmem:[%s1 + $0x358] sm:$0xff]
    %v156 = vld [vmem:[%s1 + $0x360] sm:$0xff]
    %v157 = vld [vmem:[%s1 + $0x368] sm:$0xff]
    %v158 = vld [vmem:[%s1 + $0x370] sm:$0xff]
    %v159 = vld [vmem:[%s1 + $0x378] sm:$0xff]
    %v160 = vld [vmem:[%s1 + $0x380] sm:$0xff]
    %v161 = vld [vmem:[%s1 + $0x388] sm:$0xff]
    %v162 = vld [vmem:[%s1 + $0x390] sm:$0xff]
    %v163 = vld [vmem:[%s1 + $0x398] sm:$0xff]
    %v164 = vld [vmem:[%s1 + $0x3a0] sm:$0xff]
    %v165 = vld [vmem:[%s1 + $0x3a8] sm:$0xff]
    %v166 = vld [vmem:[%s1 + $0x3b0] sm:$0xff]
    %v167 = vld [vmem:[%s1 + $0x3b8] sm:$0xff]
    %v168 = vld [vmem:[%s1 + $0x3c0] sm:$0xff]
    %v169 = vld [vmem:[%s1 + $0x3c8] sm:$0xff]
    %v170 = vld [vmem:[%s1 + $0x3d0] sm:$0xff]
    %v171 = vld [vmem:[%s1 + $0x3d8] sm:$0xff]
    %v172 = vld [vmem:[%s1 + $0x3e0] sm:$0xff]
    %v173 = vld [vmem:[%s1 + $0x3e8] sm:$0xff]
    %v174 = vld [vmem:[%s1 + $0x3f0] sm:$0xff]
    %v175 = vld [vmem:[%s1 + $0x3f8] sm:$0xff]
    %v176 = vld [vmem:[%s1 + $0x400] sm:$0xff]
    %v177 = vld [vmem:[%s1 + $0x408] sm:$0xff]
    %v178 = vld [vmem:[%s1 + $0x410] sm:$0xff]
    %v179 = vld [vmem:[%s1 + $0x418] sm:$0xff]
    %v180 = vld [vmem:[%s1 + $0x420] sm:$0xff]
    %v181 = vld [vmem:[%s1 + $0x428] sm:$0xff]
    %v182 = vld [vmem:[%s1 + $0x430] sm:$0xff]
    %v183 = vld [vmem:[%s1 + $0x438] sm:$0xff]
    %v184 = vld [vmem:[%s1 + $0x440] sm:$0xff]
    %v185 = vld [vmem:[%s1 + $0x448] sm:$0xff]
    %v186 = vld [vmem:[%s1 + $0x450] sm:$0xff]
    %v187 = vld [vmem:[%s1 + $0x458] sm:$0xff]
    %v188 = vld [vmem:[%s1 + $0x460] sm:$0xff]
    %v189 = vld [vmem:[%s1 + $0x468] sm:$0xff]
    %v190 = vld [vmem:[%s1 + $0x470] sm:$0xff]
    %v191 = vld [vmem:[%s1 + $0x478] sm:$0xff]
    %v192 = vld [vmem:[%s1 + $0x480] sm:$0xff]
    %v193 = vld [vmem:[%s1 + $0x488] sm:$0xff]
    %v194 = vld [vmem:[%s1 + $0x490] sm:$0xff]
    %v195 = vld [vmem:[%s1 + $0x498] sm:$0xff]
    %v196 = vld [vmem:[%s1 + $0x4a0] sm:$0xff]
    %v197 = vld [vmem:[%s1 + $0x4a8] sm:$0xff]
    %v198 = vld [vmem:[%s1 + $0x4b0] sm:$0xff]
    %v199 = vld [vmem:[%s1 + $0x4b8] sm:$0xff]
    %v200 = vld [vmem:[%s1 + $0x4c0] sm:$0xff]
    %v201 = vld [vmem:[%s1 + $0x4c8] sm:$0xff]
    %v202 = vld [vmem:[%s1 + $0x4d0] sm:$0xff]
    %v203 = vld [vmem:[%s1 + $0x4d8] sm:$0xff]
    %v204 = vld [vmem:[%s1 + $0x4e0] sm:$0xff]
    %v205 = vld [vmem:[%s1 + $0x4e8] sm:$0xff]
    %v206 = vld [vmem:[%s1 + $0x4f0] sm:$0xff]
    %v207 = vld [vmem:[%s1 + $0x4f8] sm:$0xff]
    %v208 = vld [vmem:[%s1 + $0x500] sm:$0xff]
    %v209 = vld [vmem:[%s1 + $0x508] sm:$0xff]
    %v210 = vld [vmem:[%s1 + $0x510] sm:$0xff]
    %v211 = vld [vmem:[%s1 + $0x518] sm:$0xff]
    %v212 = vld [vmem:[%s1 + $0x520] sm:$0xff]
    %v213 = vld [vmem:[%s1 + $0x528] sm:$0xff]
    %v214 = vld [vmem:[%s1 + $0x530] sm:$0xff]
    %v215 = vld [vmem:[%s1 + $0x538] sm:$0xff]
    %v216 = vld [vmem:[%s1 + $0x540] sm:$0xff]
    %v217 = vld [vmem:[%s1 + $0x548] sm:$0xff]
    %v218 = vld [vmem:[%s1 + $0x550] sm:$0xff]
    %v219 = vld [vmem:[%s1 + $0x558] sm:$0xff]
    %v220 = vld [vmem:[%s1 + $0x560] sm:$0xff]
    %v221 = vld [vmem:[%s1 + $0x568] sm:$0xff]
    %v222 = vld [vmem:[%s1 + $0x570] sm:$0xff]
    %v223 = vld [vmem:[%s1 + $0x578] sm:$0xff]
    %v224 = vld [vmem:[%s1 + $0x580] sm:$0xff]
    %v225 = vld [vmem:[%s1 + $0x588] sm:$0xff]
    %v226 = vld [vmem:[%s1 + $0x590] sm:$0xff]
    %v227 = vld [vmem:[%s1 + $0x598] sm:$0xff]
    %v228 = vld [vmem:[%s1 + $0x5a0] sm:$0xff]
    %v229 = vld [vmem:[%s1 + $0x5a8] sm:$0xff]
    %v230 = vld [vmem:[%s1 + $0x5b0] sm:$0xff]
    %v231 = vld [vmem:[%s1 + $0x5b8] sm:$0xff]
    %v232 = vld [vmem:[%s1 + $0x5c0] sm:$0xff]
    %v233 = vld [vmem:[%s1 + $0x5c8] sm:$0xff]
    %v234 = vld [vmem:[%s1 + $0x5d0] sm:$0xff]
    %v235 = vld [vmem:[%s1 + $0x5d8] sm:$0xff]
    %v236 = vld [vmem:[%s1 + $0x5e0] sm:$0xff]
    %v237 = vld [vmem:[%s1 + $0x5e8] sm:$0xff]
    %v238 = vld [vmem:[%s1 + $0x5f0] sm:$0xff]
    %v239 = vld [vmem:[%s1 + $0x5f8] sm:$0xff]
    %v240 = vld [vmem:[%s1 + $0x600] sm:$0xff]
    %v241 = vld [vmem:[%s1 + $0x608] sm:$0xff]
    %v242 = vld [vmem:[%s1 + $0x610] sm:$0xff]
    %v243 = vld [vmem:[%s1 + $0x618] sm:$0xff]
    %v244 = vld [vmem:[%s1 + $0x620] sm:$0xff]
    %v245 = vld [vmem:[%s1 + $0x628] sm:$0xff]
    %v246 = vld [vmem:[%s1 + $0x630] sm:$0xff]
    %v247 = vld [vmem:[%s1 + $0x638] sm:$0xff]
    %v248 = vld [vmem:[%s1 + $0x640] sm:$0xff]
    %v249 = vld [vmem:[%s1 + $0x648] sm:$0xff]
    %v250 = vld [vmem:[%s1 + $0x650] sm:$0xff]
    %v251 = vld [vmem:[%s1 + $0x658] sm:$0xff]
    %v252 = vld [vmem:[%s1 + $0x660] sm:$0xff]
    %v253 = vld [vmem:[%s1 + $0x668] sm:$0xff]
    %v254 = vld [vmem:[%s1 + $0x670] sm:$0xff]
    %v255 = vld [vmem:[%s1 + $0x678] sm:$0xff]
    %v256 = vld [vmem:[%s1 + $0x680] sm:$0xff]
    %v257 = vld [vmem:[%s1 + $0x688] sm:$0xff]
    %v258 = vld [vmem:[%s1 + $0x690] sm:$0xff]
    %v259 = vld [vmem:[%s1 + $0x698] sm:$0xff]
    %v260 = vld [vmem:[%s1 + $0x6a0] sm:$0xff]
    %v261 = vld [vmem:[%s1 + $0x6a8] sm:$0xff]
    %v262 = vld [vmem:[%s1 + $0x6b0] sm:$0xff]
    %v263 = vld [vmem:[%s1 + $0x6b8] sm:$0xff]
    %v264 = vld [vmem:[%s1 + $0x6c0] sm:$0xff]
    %v265 = vld [vmem:[%s1 + $0x6c8] sm:$0xff]
    %v266 = vld [vmem:[%s1 + $0x6d0] sm:$0xff]
    %v267 = vld [vmem:[%s1 + $0x6d8] sm:$0xff]
    %v268 = vld [vmem:[%s1 + $0x6e0] sm:$0xff]
    %v269 = vld [vmem:[%s1 + $0x6e8] sm:$0xff]
    %v270 = vld [vmem:[%s1 + $0x6f0] sm:$0xff]
    %v271 = vld [vmem:[%s1 + $0x6f8] sm:$0xff]
    %v272 = vld [vmem:[%s1 + $0x700] sm:$0xff]
    %v273 = vld [vmem:[%s1 + $0x708] sm:$0xff]
    %v274 = vld [vmem:[%s1 + $0x710] sm:$0xff]
    %v275 = vld [vmem:[%s1 + $0x718] sm:$0xff]
    %v276 = vld [vmem:[%s1 + $0x720] sm:$0xff]
    %v277 = vld [vmem:[%s1 + $0x728] sm:$0xff]
    %v278 = vld [vmem:[%s1 + $0x730] sm:$0xff]
    %v279 = vld [vmem:[%s1 + $0x738] sm:$0xff]
    %v280 = vld [vmem:[%s1 + $0x740] sm:$0xff]
    %v281 = vld [vmem:[%s1 + $0x748] sm:$0xff]
    %v282 = vld [vmem:[%s1 + $0x750] sm:$0xff]
    %v283 = vld [vmem:[%s1 + $0x758] sm:$0xff]
    %v284 = vld [vmem:[%s1 + $0x760] sm:$0xff]
    %v285 = vld [vmem:[%s1 + $0x768] sm:$0xff]
    %v286 = vld [vmem:[%s1 + $0x770] sm:$0xff]
    %v287 = vld [vmem:[%s1 + $0x778] sm:$0xff]
    %v288 = vld [vmem:[%s1 + $0x780] sm:$0xff]
    %v289 = vld [vmem:[%s1 + $0x788] sm:$0xff]
    %v290 = vld [vmem:[%s1 + $0x790] sm:$0xff]
    %v291 = vld [vmem:[%s1 + $0x798] sm:$0xff]
    %v292 = vld [vmem:[%s1 + $0x7a0] sm:$0xff]
    %v293 = vld [vmem:[%s1 + $0x7a8] sm:$0xff]
    %v294 = vld [vmem:[%s1 + $0x7b0] sm:$0xff]
    %v295 = vld [vmem:[%s1 + $0x7b8] sm:$0xff]
    %v296 = vld [vmem:[%s1 + $0x7c0] sm:$0xff]
    %v297 = vld [vmem:[%s1 + $0x7c8] sm:$0xff]
    %v298 = vld [vmem:[%s1 + $0x7d0] sm:$0xff]
    %v299 = vld [vmem:[%s1 + $0x7d8] sm:$0xff]
    %v300 = vld [vmem:[%s1 + $0x7e0] sm:$0xff]
    %v301 = vld [vmem:[%s1 + $0x7e8] sm:$0xff]
    %v302 = vld [vmem:[%s1 + $0x7f0] sm:$0xff]
    %v303 = vld [vmem:[%s1 + $0x7f8] sm:$0xff]
    %v304 = vld [vmem:[%s2] sm:$0xff]
    %v306 = vlaneseq
    %v307 = vshrl.u32 %v306, 7
    %v308 = vsub.s32 0, %v307
    %v309 = vrot.slane %v304, %v308
    %v310 = vlaneseq
    %v311 = vshrl.u32 %v310, 7
    %v312 = vsub.s32 1, %v311
    %v313 = vrot.slane %v304, %v312
    %v314 = vlaneseq
    %v315 = vshrl.u32 %v314, 7
    %v316 = vsub.s32 2, %v315
    %v317 = vrot.slane %v304, %v316
    %v318 = vlaneseq
    %v319 = vshrl.u32 %v318, 7
    %v320 = vsub.s32 3, %v319
    %v321 = vrot.slane %v304, %v320
    %v322 = vlaneseq
    %v323 = vshrl.u32 %v322, 7
    %v324 = vsub.s32 4, %v323
    %v325 = vrot.slane %v304, %v324
    %v326 = vlaneseq
    %v327 = vshrl.u32 %v326, 7
    %v328 = vsub.s32 5, %v327
    %v329 = vrot.slane %v304, %v328
    %v330 = vlaneseq
    %v331 = vshrl.u32 %v330, 7
    %v332 = vsub.s32 6, %v331
    %v333 = vrot.slane %v304, %v332
    %v334 = vlaneseq
    %v335 = vshrl.u32 %v334, 7
    %v336 = vsub.s32 7, %v335
    %v337 = vrot.slane %v304, %v336
    %v378 = vunpack.c.l.b16 %v16
    %v379 = vunpack.c.h.b16 %v16
    %v380 = vunpack.c.l.b16 %v17
    %v381 = vunpack.c.h.b16 %v17
    %v382 = vunpack.c.l.b16 %v18
    %v383 = vunpack.c.h.b16 %v18
    %v384 = vunpack.c.l.b16 %v19
    %v385 = vunpack.c.h.b16 %v19
    %v386 = vunpack.c.l.b16 %v20
    %v387 = vunpack.c.h.b16 %v20
    %v388 = vunpack.c.l.b16 %v21
    %v389 = vunpack.c.h.b16 %v21
    %v390 = vunpack.c.l.b16 %v22
    %v391 = vunpack.c.h.b16 %v22
    %v392 = vunpack.c.l.b16 %v23
    %v393 = vunpack.c.h.b16 %v23
    %v394 = vunpack.c.l.b16 %v24
    %v395 = vunpack.c.h.b16 %v24
    %v396 = vunpack.c.l.b16 %v25
    %v397 = vunpack.c.h.b16 %v25
    %v398 = vunpack.c.l.b16 %v26
    %v399 = vunpack.c.h.b16 %v26
    %v400 = vunpack.c.l.b16 %v27
    %v401 = vunpack.c.h.b16 %v27
    %v402 = vunpack.c.l.b16 %v28
    %v403 = vunpack.c.h.b16 %v28
    %v404 = vunpack.c.l.b16 %v29
    %v405 = vunpack.c.h.b16 %v29
    %v406 = vunpack.c.l.b16 %v30
    %v407 = vunpack.c.h.b16 %v30
    %v408 = vunpack.c.l.b16 %v31
    %v409 = vunpack.c.h.b16 %v31
    %v410 = vunpack.c.l.b16 %v32
    %v411 = vunpack.c.h.b16 %v32
    %v412 = vunpack.c.l.b16 %v33
    %v413 = vunpack.c.h.b16 %v33
    %v414 = vunpack.c.l.b16 %v34
    %v415 = vunpack.c.h.b16 %v34
    %v416 = vunpack.c.l.b16 %v35
    %v417 = vunpack.c.h.b16 %v35
    %v418 = vunpack.c.l.b16 %v36
    %v419 = vunpack.c.h.b16 %v36
    %v420 = vunpack.c.l.b16 %v37
    %v421 = vunpack.c.h.b16 %v37
    %v422 = vunpack.c.l.b16 %v38
    %v423 = vunpack.c.h.b16 %v38
    %v424 = vunpack.c.l.b16 %v39
    %v425 = vunpack.c.h.b16 %v39
    %v426 = vunpack.c.l.b16 %v40
    %v427 = vunpack.c.h.b16 %v40
    %v428 = vunpack.c.l.b16 %v41
    %v429 = vunpack.c.h.b16 %v41
    %v430 = vunpack.c.l.b16 %v42
    %v431 = vunpack.c.h.b16 %v42
    %v432 = vunpack.c.l.b16 %v43
    %v433 = vunpack.c.h.b16 %v43
    %v434 = vunpack.c.l.b16 %v44
    %v435 = vunpack.c.h.b16 %v44
    %v436 = vunpack.c.l.b16 %v45
    %v437 = vunpack.c.h.b16 %v45
    %v438 = vunpack.c.l.b16 %v46
    %v439 = vunpack.c.h.b16 %v46
    %v440 = vunpack.c.l.b16 %v47
    %v441 = vunpack.c.h.b16 %v47
    %v442 = vpack.c.b16 %v382, %v378
    %v443 = vpack.c.b16 %v383, %v379
    %v444 = vpack.c.b16 %v384, %v380
    %v445 = vpack.c.b16 %v385, %v381
    %v446 = vpack.c.b16 %v390, %v386
    %v447 = vpack.c.b16 %v391, %v387
    %v448 = vpack.c.b16 %v392, %v388
    %v449 = vpack.c.b16 %v393, %v389
    %v450 = vpack.c.b16 %v398, %v394
    %v451 = vpack.c.b16 %v399, %v395
    %v452 = vpack.c.b16 %v400, %v396
    %v453 = vpack.c.b16 %v401, %v397
    %v454 = vpack.c.b16 %v406, %v402
    %v455 = vpack.c.b16 %v407, %v403
    %v456 = vpack.c.b16 %v408, %v404
    %v457 = vpack.c.b16 %v409, %v405
    %v458 = vpack.c.b16 %v414, %v410
    %v459 = vpack.c.b16 %v415, %v411
    %v460 = vpack.c.b16 %v416, %v412
    %v461 = vpack.c.b16 %v417, %v413
    %v462 = vpack.c.b16 %v422, %v418
    %v463 = vpack.c.b16 %v423, %v419
    %v464 = vpack.c.b16 %v424, %v420
    %v465 = vpack.c.b16 %v425, %v421
    %v466 = vpack.c.b16 %v430, %v426
    %v467 = vpack.c.b16 %v431, %v427
    %v468 = vpack.c.b16 %v432, %v428
    %v469 = vpack.c.b16 %v433, %v429
    %v470 = vpack.c.b16 %v438, %v434
    %v471 = vpack.c.b16 %v439, %v435
    %v472 = vpack.c.b16 %v440, %v436
    %v473 = vpack.c.b16 %v441, %v437
    %v762 = vunpack.c.l.b16 %v48
    %v763 = vunpack.c.h.b16 %v48
    %v764 = vunpack.c.l.b16 %v49
    %v765 = vunpack.c.h.b16 %v49
    %v766 = vunpack.c.l.b16 %v50
    %v767 = vunpack.c.h.b16 %v50
    %v768 = vunpack.c.l.b16 %v51
    %v769 = vunpack.c.h.b16 %v51
    %v770 = vunpack.c.l.b16 %v52
    %v771 = vunpack.c.h.b16 %v52
    %v772 = vunpack.c.l.b16 %v53
    %v773 = vunpack.c.h.b16 %v53
    %v774 = vunpack.c.l.b16 %v54
    %v775 = vunpack.c.h.b16 %v54
    %v776 = vunpack.c.l.b16 %v55
    %v777 = vunpack.c.h.b16 %v55
    %v778 = vunpack.c.l.b16 %v56
    %v779 = vunpack.c.h.b16 %v56
    %v780 = vunpack.c.l.b16 %v57
    %v781 = vunpack.c.h.b16 %v57
    %v782 = vunpack.c.l.b16 %v58
    %v783 = vunpack.c.h.b16 %v58
    %v784 = vunpack.c.l.b16 %v59
    %v785 = vunpack.c.h.b16 %v59
    %v786 = vunpack.c.l.b16 %v60
    %v787 = vunpack.c.h.b16 %v60
    %v788 = vunpack.c.l.b16 %v61
    %v789 = vunpack.c.h.b16 %v61
    %v790 = vunpack.c.l.b16 %v62
    %v791 = vunpack.c.h.b16 %v62
    %v792 = vunpack.c.l.b16 %v63
    %v793 = vunpack.c.h.b16 %v63
    %v794 = vunpack.c.l.b16 %v64
    %v795 = vunpack.c.h.b16 %v64
    %v796 = vunpack.c.l.b16 %v65
    %v797 = vunpack.c.h.b16 %v65
    %v798 = vunpack.c.l.b16 %v66
    %v799 = vunpack.c.h.b16 %v66
    %v800 = vunpack.c.l.b16 %v67
    %v801 = vunpack.c.h.b16 %v67
    %v802 = vunpack.c.l.b16 %v68
    %v803 = vunpack.c.h.b16 %v68
    %v804 = vunpack.c.l.b16 %v69
    %v805 = vunpack.c.h.b16 %v69
    %v806 = vunpack.c.l.b16 %v70
    %v807 = vunpack.c.h.b16 %v70
    %v808 = vunpack.c.l.b16 %v71
    %v809 = vunpack.c.h.b16 %v71
    %v810 = vunpack.c.l.b16 %v72
    %v811 = vunpack.c.h.b16 %v72
    %v812 = vunpack.c.l.b16 %v73
    %v813 = vunpack.c.h.b16 %v73
    %v814 = vunpack.c.l.b16 %v74
    %v815 = vunpack.c.h.b16 %v74
    %v816 = vunpack.c.l.b16 %v75
    %v817 = vunpack.c.h.b16 %v75
    %v818 = vunpack.c.l.b16 %v76
    %v819 = vunpack.c.h.b16 %v76
    %v820 = vunpack.c.l.b16 %v77
    %v821 = vunpack.c.h.b16 %v77
    %v822 = vunpack.c.l.b16 %v78
    %v823 = vunpack.c.h.b16 %v78
    %v824 = vunpack.c.l.b16 %v79
    %v825 = vunpack.c.h.b16 %v79
    %v826 = vunpack.c.l.b16 %v80
    %v827 = vunpack.c.h.b16 %v80
    %v828 = vunpack.c.l.b16 %v81
    %v829 = vunpack.c.h.b16 %v81
    %v830 = vunpack.c.l.b16 %v82
    %v831 = vunpack.c.h.b16 %v82
    %v832 = vunpack.c.l.b16 %v83
    %v833 = vunpack.c.h.b16 %v83
    %v834 = vunpack.c.l.b16 %v84
    %v835 = vunpack.c.h.b16 %v84
    %v836 = vunpack.c.l.b16 %v85
    %v837 = vunpack.c.h.b16 %v85
    %v838 = vunpack.c.l.b16 %v86
    %v839 = vunpack.c.h.b16 %v86
    %v840 = vunpack.c.l.b16 %v87
    %v841 = vunpack.c.h.b16 %v87
    %v842 = vunpack.c.l.b16 %v88
    %v843 = vunpack.c.h.b16 %v88
    %v844 = vunpack.c.l.b16 %v89
    %v845 = vunpack.c.h.b16 %v89
    %v846 = vunpack.c.l.b16 %v90
    %v847 = vunpack.c.h.b16 %v90
    %v848 = vunpack.c.l.b16 %v91
    %v849 = vunpack.c.h.b16 %v91
    %v850 = vunpack.c.l.b16 %v92
    %v851 = vunpack.c.h.b16 %v92
    %v852 = vunpack.c.l.b16 %v93
    %v853 = vunpack.c.h.b16 %v93
    %v854 = vunpack.c.l.b16 %v94
    %v855 = vunpack.c.h.b16 %v94
    %v856 = vunpack.c.l.b16 %v95
    %v857 = vunpack.c.h.b16 %v95
    %v858 = vunpack.c.l.b16 %v96
    %v859 = vunpack.c.h.b16 %v96
    %v860 = vunpack.c.l.b16 %v97
    %v861 = vunpack.c.h.b16 %v97
    %v862 = vunpack.c.l.b16 %v98
    %v863 = vunpack.c.h.b16 %v98
    %v864 = vunpack.c.l.b16 %v99
    %v865 = vunpack.c.h.b16 %v99
    %v866 = vunpack.c.l.b16 %v100
    %v867 = vunpack.c.h.b16 %v100
    %v868 = vunpack.c.l.b16 %v101
    %v869 = vunpack.c.h.b16 %v101
    %v870 = vunpack.c.l.b16 %v102
    %v871 = vunpack.c.h.b16 %v102
    %v872 = vunpack.c.l.b16 %v103
    %v873 = vunpack.c.h.b16 %v103
    %v874 = vunpack.c.l.b16 %v104
    %v875 = vunpack.c.h.b16 %v104
    %v876 = vunpack.c.l.b16 %v105
    %v877 = vunpack.c.h.b16 %v105
    %v878 = vunpack.c.l.b16 %v106
    %v879 = vunpack.c.h.b16 %v106
    %v880 = vunpack.c.l.b16 %v107
    %v881 = vunpack.c.h.b16 %v107
    %v882 = vunpack.c.l.b16 %v108
    %v883 = vunpack.c.h.b16 %v108
    %v884 = vunpack.c.l.b16 %v109
    %v885 = vunpack.c.h.b16 %v109
    %v886 = vunpack.c.l.b16 %v110
    %v887 = vunpack.c.h.b16 %v110
    %v888 = vunpack.c.l.b16 %v111
    %v889 = vunpack.c.h.b16 %v111
    %v890 = vunpack.c.l.b16 %v112
    %v891 = vunpack.c.h.b16 %v112
    %v892 = vunpack.c.l.b16 %v113
    %v893 = vunpack.c.h.b16 %v113
    %v894 = vunpack.c.l.b16 %v114
    %v895 = vunpack.c.h.b16 %v114
    %v896 = vunpack.c.l.b16 %v115
    %v897 = vunpack.c.h.b16 %v115
    %v898 = vunpack.c.l.b16 %v116
    %v899 = vunpack.c.h.b16 %v116
    %v900 = vunpack.c.l.b16 %v117
    %v901 = vunpack.c.h.b16 %v117
    %v902 = vunpack.c.l.b16 %v118
    %v903 = vunpack.c.h.b16 %v118
    %v904 = vunpack.c.l.b16 %v119
    %v905 = vunpack.c.h.b16 %v119
    %v906 = vunpack.c.l.b16 %v120
    %v907 = vunpack.c.h.b16 %v120
    %v908 = vunpack.c.l.b16 %v121
    %v909 = vunpack.c.h.b16 %v121
    %v910 = vunpack.c.l.b16 %v122
    %v911 = vunpack.c.h.b16 %v122
    %v912 = vunpack.c.l.b16 %v123
    %v913 = vunpack.c.h.b16 %v123
    %v914 = vunpack.c.l.b16 %v124
    %v915 = vunpack.c.h.b16 %v124
    %v916 = vunpack.c.l.b16 %v125
    %v917 = vunpack.c.h.b16 %v125
    %v918 = vunpack.c.l.b16 %v126
    %v919 = vunpack.c.h.b16 %v126
    %v920 = vunpack.c.l.b16 %v127
    %v921 = vunpack.c.h.b16 %v127
    %v922 = vunpack.c.l.b16 %v128
    %v923 = vunpack.c.h.b16 %v128
    %v924 = vunpack.c.l.b16 %v129
    %v925 = vunpack.c.h.b16 %v129
    %v926 = vunpack.c.l.b16 %v130
    %v927 = vunpack.c.h.b16 %v130
    %v928 = vunpack.c.l.b16 %v131
    %v929 = vunpack.c.h.b16 %v131
    %v930 = vunpack.c.l.b16 %v132
    %v931 = vunpack.c.h.b16 %v132
    %v932 = vunpack.c.l.b16 %v133
    %v933 = vunpack.c.h.b16 %v133
    %v934 = vunpack.c.l.b16 %v134
    %v935 = vunpack.c.h.b16 %v134
    %v936 = vunpack.c.l.b16 %v135
    %v937 = vunpack.c.h.b16 %v135
    %v938 = vunpack.c.l.b16 %v136
    %v939 = vunpack.c.h.b16 %v136
    %v940 = vunpack.c.l.b16 %v137
    %v941 = vunpack.c.h.b16 %v137
    %v942 = vunpack.c.l.b16 %v138
    %v943 = vunpack.c.h.b16 %v138
    %v944 = vunpack.c.l.b16 %v139
    %v945 = vunpack.c.h.b16 %v139
    %v946 = vunpack.c.l.b16 %v140
    %v947 = vunpack.c.h.b16 %v140
    %v948 = vunpack.c.l.b16 %v141
    %v949 = vunpack.c.h.b16 %v141
    %v950 = vunpack.c.l.b16 %v142
    %v951 = vunpack.c.h.b16 %v142
    %v952 = vunpack.c.l.b16 %v143
    %v953 = vunpack.c.h.b16 %v143
    %v954 = vunpack.c.l.b16 %v144
    %v955 = vunpack.c.h.b16 %v144
    %v956 = vunpack.c.l.b16 %v145
    %v957 = vunpack.c.h.b16 %v145
    %v958 = vunpack.c.l.b16 %v146
    %v959 = vunpack.c.h.b16 %v146
    %v960 = vunpack.c.l.b16 %v147
    %v961 = vunpack.c.h.b16 %v147
    %v962 = vunpack.c.l.b16 %v148
    %v963 = vunpack.c.h.b16 %v148
    %v964 = vunpack.c.l.b16 %v149
    %v965 = vunpack.c.h.b16 %v149
    %v966 = vunpack.c.l.b16 %v150
    %v967 = vunpack.c.h.b16 %v150
    %v968 = vunpack.c.l.b16 %v151
    %v969 = vunpack.c.h.b16 %v151
    %v970 = vunpack.c.l.b16 %v152
    %v971 = vunpack.c.h.b16 %v152
    %v972 = vunpack.c.l.b16 %v153
    %v973 = vunpack.c.h.b16 %v153
    %v974 = vunpack.c.l.b16 %v154
    %v975 = vunpack.c.h.b16 %v154
    %v976 = vunpack.c.l.b16 %v155
    %v977 = vunpack.c.h.b16 %v155
    %v978 = vunpack.c.l.b16 %v156
    %v979 = vunpack.c.h.b16 %v156
    %v980 = vunpack.c.l.b16 %v157
    %v981 = vunpack.c.h.b16 %v157
    %v982 = vunpack.c.l.b16 %v158
    %v983 = vunpack.c.h.b16 %v158
    %v984 = vunpack.c.l.b16 %v159
    %v985 = vunpack.c.h.b16 %v159
    %v986 = vunpack.c.l.b16 %v160
    %v987 = vunpack.c.h.b16 %v160
    %v988 = vunpack.c.l.b16 %v161
    %v989 = vunpack.c.h.b16 %v161
    %v990 = vunpack.c.l.b16 %v162
    %v991 = vunpack.c.h.b16 %v162
    %v992 = vunpack.c.l.b16 %v163
    %v993 = vunpack.c.h.b16 %v163
    %v994 = vunpack.c.l.b16 %v164
    %v995 = vunpack.c.h.b16 %v164
    %v996 = vunpack.c.l.b16 %v165
    %v997 = vunpack.c.h.b16 %v165
    %v998 = vunpack.c.l.b16 %v166
    %v999 = vunpack.c.h.b16 %v166
    %v1000 = vunpack.c.l.b16 %v167
    %v1001 = vunpack.c.h.b16 %v167
    %v1002 = vunpack.c.l.b16 %v168
    %v1003 = vunpack.c.h.b16 %v168
    %v1004 = vunpack.c.l.b16 %v169
    %v1005 = vunpack.c.h.b16 %v169
    %v1006 = vunpack.c.l.b16 %v170
    %v1007 = vunpack.c.h.b16 %v170
    %v1008 = vunpack.c.l.b16 %v171
    %v1009 = vunpack.c.h.b16 %v171
    %v1010 = vunpack.c.l.b16 %v172
    %v1011 = vunpack.c.h.b16 %v172
    %v1012 = vunpack.c.l.b16 %v173
    %v1013 = vunpack.c.h.b16 %v173
    %v1014 = vunpack.c.l.b16 %v174
    %v1015 = vunpack.c.h.b16 %v174
    %v1016 = vunpack.c.l.b16 %v175
    %v1017 = vunpack.c.h.b16 %v175
    %v1018 = vunpack.c.l.b16 %v176
    %v1019 = vunpack.c.h.b16 %v176
    %v1020 = vunpack.c.l.b16 %v177
    %v1021 = vunpack.c.h.b16 %v177
    %v1022 = vunpack.c.l.b16 %v178
    %v1023 = vunpack.c.h.b16 %v178
    %v1024 = vunpack.c.l.b16 %v179
    %v1025 = vunpack.c.h.b16 %v179
    %v1026 = vunpack.c.l.b16 %v180
    %v1027 = vunpack.c.h.b16 %v180
    %v1028 = vunpack.c.l.b16 %v181
    %v1029 = vunpack.c.h.b16 %v181
    %v1030 = vunpack.c.l.b16 %v182
    %v1031 = vunpack.c.h.b16 %v182
    %v1032 = vunpack.c.l.b16 %v183
    %v1033 = vunpack.c.h.b16 %v183
    %v1034 = vunpack.c.l.b16 %v184
    %v1035 = vunpack.c.h.b16 %v184
    %v1036 = vunpack.c.l.b16 %v185
    %v1037 = vunpack.c.h.b16 %v185
    %v1038 = vunpack.c.l.b16 %v186
    %v1039 = vunpack.c.h.b16 %v186
    %v1040 = vunpack.c.l.b16 %v187
    %v1041 = vunpack.c.h.b16 %v187
    %v1042 = vunpack.c.l.b16 %v188
    %v1043 = vunpack.c.h.b16 %v188
    %v1044 = vunpack.c.l.b16 %v189
    %v1045 = vunpack.c.h.b16 %v189
    %v1046 = vunpack.c.l.b16 %v190
    %v1047 = vunpack.c.h.b16 %v190
    %v1048 = vunpack.c.l.b16 %v191
    %v1049 = vunpack.c.h.b16 %v191
    %v1050 = vunpack.c.l.b16 %v192
    %v1051 = vunpack.c.h.b16 %v192
    %v1052 = vunpack.c.l.b16 %v193
    %v1053 = vunpack.c.h.b16 %v193
    %v1054 = vunpack.c.l.b16 %v194
    %v1055 = vunpack.c.h.b16 %v194
    %v1056 = vunpack.c.l.b16 %v195
    %v1057 = vunpack.c.h.b16 %v195
    %v1058 = vunpack.c.l.b16 %v196
    %v1059 = vunpack.c.h.b16 %v196
    %v1060 = vunpack.c.l.b16 %v197
    %v1061 = vunpack.c.h.b16 %v197
    %v1062 = vunpack.c.l.b16 %v198
    %v1063 = vunpack.c.h.b16 %v198
    %v1064 = vunpack.c.l.b16 %v199
    %v1065 = vunpack.c.h.b16 %v199
    %v1066 = vunpack.c.l.b16 %v200
    %v1067 = vunpack.c.h.b16 %v200
    %v1068 = vunpack.c.l.b16 %v201
    %v1069 = vunpack.c.h.b16 %v201
    %v1070 = vunpack.c.l.b16 %v202
    %v1071 = vunpack.c.h.b16 %v202
    %v1072 = vunpack.c.l.b16 %v203
    %v1073 = vunpack.c.h.b16 %v203
    %v1074 = vunpack.c.l.b16 %v204
    %v1075 = vunpack.c.h.b16 %v204
    %v1076 = vunpack.c.l.b16 %v205
    %v1077 = vunpack.c.h.b16 %v205
    %v1078 = vunpack.c.l.b16 %v206
    %v1079 = vunpack.c.h.b16 %v206
    %v1080 = vunpack.c.l.b16 %v207
    %v1081 = vunpack.c.h.b16 %v207
    %v1082 = vunpack.c.l.b16 %v208
    %v1083 = vunpack.c.h.b16 %v208
    %v1084 = vunpack.c.l.b16 %v209
    %v1085 = vunpack.c.h.b16 %v209
    %v1086 = vunpack.c.l.b16 %v210
    %v1087 = vunpack.c.h.b16 %v210
    %v1088 = vunpack.c.l.b16 %v211
    %v1089 = vunpack.c.h.b16 %v211
    %v1090 = vunpack.c.l.b16 %v212
    %v1091 = vunpack.c.h.b16 %v212
    %v1092 = vunpack.c.l.b16 %v213
    %v1093 = vunpack.c.h.b16 %v213
    %v1094 = vunpack.c.l.b16 %v214
    %v1095 = vunpack.c.h.b16 %v214
    %v1096 = vunpack.c.l.b16 %v215
    %v1097 = vunpack.c.h.b16 %v215
    %v1098 = vunpack.c.l.b16 %v216
    %v1099 = vunpack.c.h.b16 %v216
    %v1100 = vunpack.c.l.b16 %v217
    %v1101 = vunpack.c.h.b16 %v217
    %v1102 = vunpack.c.l.b16 %v218
    %v1103 = vunpack.c.h.b16 %v218
    %v1104 = vunpack.c.l.b16 %v219
    %v1105 = vunpack.c.h.b16 %v219
    %v1106 = vunpack.c.l.b16 %v220
    %v1107 = vunpack.c.h.b16 %v220
    %v1108 = vunpack.c.l.b16 %v221
    %v1109 = vunpack.c.h.b16 %v221
    %v1110 = vunpack.c.l.b16 %v222
    %v1111 = vunpack.c.h.b16 %v222
    %v1112 = vunpack.c.l.b16 %v223
    %v1113 = vunpack.c.h.b16 %v223
    %v1114 = vunpack.c.l.b16 %v224
    %v1115 = vunpack.c.h.b16 %v224
    %v1116 = vunpack.c.l.b16 %v225
    %v1117 = vunpack.c.h.b16 %v225
    %v1118 = vunpack.c.l.b16 %v226
    %v1119 = vunpack.c.h.b16 %v226
    %v1120 = vunpack.c.l.b16 %v227
    %v1121 = vunpack.c.h.b16 %v227
    %v1122 = vunpack.c.l.b16 %v228
    %v1123 = vunpack.c.h.b16 %v228
    %v1124 = vunpack.c.l.b16 %v229
    %v1125 = vunpack.c.h.b16 %v229
    %v1126 = vunpack.c.l.b16 %v230
    %v1127 = vunpack.c.h.b16 %v230
    %v1128 = vunpack.c.l.b16 %v231
    %v1129 = vunpack.c.h.b16 %v231
    %v1130 = vunpack.c.l.b16 %v232
    %v1131 = vunpack.c.h.b16 %v232
    %v1132 = vunpack.c.l.b16 %v233
    %v1133 = vunpack.c.h.b16 %v233
    %v1134 = vunpack.c.l.b16 %v234
    %v1135 = vunpack.c.h.b16 %v234
    %v1136 = vunpack.c.l.b16 %v235
    %v1137 = vunpack.c.h.b16 %v235
    %v1138 = vunpack.c.l.b16 %v236
    %v1139 = vunpack.c.h.b16 %v236
    %v1140 = vunpack.c.l.b16 %v237
    %v1141 = vunpack.c.h.b16 %v237
    %v1142 = vunpack.c.l.b16 %v238
    %v1143 = vunpack.c.h.b16 %v238
    %v1144 = vunpack.c.l.b16 %v239
    %v1145 = vunpack.c.h.b16 %v239
    %v1146 = vunpack.c.l.b16 %v240
    %v1147 = vunpack.c.h.b16 %v240
    %v1148 = vunpack.c.l.b16 %v241
    %v1149 = vunpack.c.h.b16 %v241
    %v1150 = vunpack.c.l.b16 %v242
    %v1151 = vunpack.c.h.b16 %v242
    %v1152 = vunpack.c.l.b16 %v243
    %v1153 = vunpack.c.h.b16 %v243
    %v1154 = vunpack.c.l.b16 %v244
    %v1155 = vunpack.c.h.b16 %v244
    %v1156 = vunpack.c.l.b16 %v245
    %v1157 = vunpack.c.h.b16 %v245
    %v1158 = vunpack.c.l.b16 %v246
    %v1159 = vunpack.c.h.b16 %v246
    %v1160 = vunpack.c.l.b16 %v247
    %v1161 = vunpack.c.h.b16 %v247
    %v1162 = vunpack.c.l.b16 %v248
    %v1163 = vunpack.c.h.b16 %v248
    %v1164 = vunpack.c.l.b16 %v249
    %v1165 = vunpack.c.h.b16 %v249
    %v1166 = vunpack.c.l.b16 %v250
    %v1167 = vunpack.c.h.b16 %v250
    %v1168 = vunpack.c.l.b16 %v251
    %v1169 = vunpack.c.h.b16 %v251
    %v1170 = vunpack.c.l.b16 %v252
    %v1171 = vunpack.c.h.b16 %v252
    %v1172 = vunpack.c.l.b16 %v253
    %v1173 = vunpack.c.h.b16 %v253
    %v1174 = vunpack.c.l.b16 %v254
    %v1175 = vunpack.c.h.b16 %v254
    %v1176 = vunpack.c.l.b16 %v255
    %v1177 = vunpack.c.h.b16 %v255
    %v1178 = vunpack.c.l.b16 %v256
    %v1179 = vunpack.c.h.b16 %v256
    %v1180 = vunpack.c.l.b16 %v257
    %v1181 = vunpack.c.h.b16 %v257
    %v1182 = vunpack.c.l.b16 %v258
    %v1183 = vunpack.c.h.b16 %v258
    %v1184 = vunpack.c.l.b16 %v259
    %v1185 = vunpack.c.h.b16 %v259
    %v1186 = vunpack.c.l.b16 %v260
    %v1187 = vunpack.c.h.b16 %v260
    %v1188 = vunpack.c.l.b16 %v261
    %v1189 = vunpack.c.h.b16 %v261
    %v1190 = vunpack.c.l.b16 %v262
    %v1191 = vunpack.c.h.b16 %v262
    %v1192 = vunpack.c.l.b16 %v263
    %v1193 = vunpack.c.h.b16 %v263
    %v1194 = vunpack.c.l.b16 %v264
    %v1195 = vunpack.c.h.b16 %v264
    %v1196 = vunpack.c.l.b16 %v265
    %v1197 = vunpack.c.h.b16 %v265
    %v1198 = vunpack.c.l.b16 %v266
    %v1199 = vunpack.c.h.b16 %v266
    %v1200 = vunpack.c.l.b16 %v267
    %v1201 = vunpack.c.h.b16 %v267
    %v1202 = vunpack.c.l.b16 %v268
    %v1203 = vunpack.c.h.b16 %v268
    %v1204 = vunpack.c.l.b16 %v269
    %v1205 = vunpack.c.h.b16 %v269
    %v1206 = vunpack.c.l.b16 %v270
    %v1207 = vunpack.c.h.b16 %v270
    %v1208 = vunpack.c.l.b16 %v271
    %v1209 = vunpack.c.h.b16 %v271
    %v1210 = vunpack.c.l.b16 %v272
    %v1211 = vunpack.c.h.b16 %v272
    %v1212 = vunpack.c.l.b16 %v273
    %v1213 = vunpack.c.h.b16 %v273
    %v1214 = vunpack.c.l.b16 %v274
    %v1215 = vunpack.c.h.b16 %v274
    %v1216 = vunpack.c.l.b16 %v275
    %v1217 = vunpack.c.h.b16 %v275
    %v1218 = vunpack.c.l.b16 %v276
    %v1219 = vunpack.c.h.b16 %v276
    %v1220 = vunpack.c.l.b16 %v277
    %v1221 = vunpack.c.h.b16 %v277
    %v1222 = vunpack.c.l.b16 %v278
    %v1223 = vunpack.c.h.b16 %v278
    %v1224 = vunpack.c.l.b16 %v279
    %v1225 = vunpack.c.h.b16 %v279
    %v1226 = vunpack.c.l.b16 %v280
    %v1227 = vunpack.c.h.b16 %v280
    %v1228 = vunpack.c.l.b16 %v281
    %v1229 = vunpack.c.h.b16 %v281
    %v1230 = vunpack.c.l.b16 %v282
    %v1231 = vunpack.c.h.b16 %v282
    %v1232 = vunpack.c.l.b16 %v283
    %v1233 = vunpack.c.h.b16 %v283
    %v1234 = vunpack.c.l.b16 %v284
    %v1235 = vunpack.c.h.b16 %v284
    %v1236 = vunpack.c.l.b16 %v285
    %v1237 = vunpack.c.h.b16 %v285
    %v1238 = vunpack.c.l.b16 %v286
    %v1239 = vunpack.c.h.b16 %v286
    %v1240 = vunpack.c.l.b16 %v287
    %v1241 = vunpack.c.h.b16 %v287
    %v1242 = vunpack.c.l.b16 %v288
    %v1243 = vunpack.c.h.b16 %v288
    %v1244 = vunpack.c.l.b16 %v289
    %v1245 = vunpack.c.h.b16 %v289
    %v1246 = vunpack.c.l.b16 %v290
    %v1247 = vunpack.c.h.b16 %v290
    %v1248 = vunpack.c.l.b16 %v291
    %v1249 = vunpack.c.h.b16 %v291
    %v1250 = vunpack.c.l.b16 %v292
    %v1251 = vunpack.c.h.b16 %v292
    %v1252 = vunpack.c.l.b16 %v293
    %v1253 = vunpack.c.h.b16 %v293
    %v1254 = vunpack.c.l.b16 %v294
    %v1255 = vunpack.c.h.b16 %v294
    %v1256 = vunpack.c.l.b16 %v295
    %v1257 = vunpack.c.h.b16 %v295
    %v1258 = vunpack.c.l.b16 %v296
    %v1259 = vunpack.c.h.b16 %v296
    %v1260 = vunpack.c.l.b16 %v297
    %v1261 = vunpack.c.h.b16 %v297
    %v1262 = vunpack.c.l.b16 %v298
    %v1263 = vunpack.c.h.b16 %v298
    %v1264 = vunpack.c.l.b16 %v299
    %v1265 = vunpack.c.h.b16 %v299
    %v1266 = vunpack.c.l.b16 %v300
    %v1267 = vunpack.c.h.b16 %v300
    %v1268 = vunpack.c.l.b16 %v301
    %v1269 = vunpack.c.h.b16 %v301
    %v1270 = vunpack.c.l.b16 %v302
    %v1271 = vunpack.c.h.b16 %v302
    %v1272 = vunpack.c.l.b16 %v303
    %v1273 = vunpack.c.h.b16 %v303
    %v1274 = vpack.c.b16 %v770, %v762
    %v1275 = vpack.c.b16 %v771, %v763
    %v1276 = vpack.c.b16 %v772, %v764
    %v1277 = vpack.c.b16 %v773, %v765
    %v1278 = vpack.c.b16 %v774, %v766
    %v1279 = vpack.c.b16 %v775, %v767
    %v1280 = vpack.c.b16 %v776, %v768
    %v1281 = vpack.c.b16 %v777, %v769
    %v1282 = vpack.c.b16 %v786, %v778
    %v1283 = vpack.c.b16 %v787, %v779
    %v1284 = vpack.c.b16 %v788, %v780
    %v1285 = vpack.c.b16 %v789, %v781
    %v1286 = vpack.c.b16 %v790, %v782
    %v1287 = vpack.c.b16 %v791, %v783
    %v1288 = vpack.c.b16 %v792, %v784
    %v1289 = vpack.c.b16 %v793, %v785
    %v1290 = vpack.c.b16 %v802, %v794
    %v1291 = vpack.c.b16 %v803, %v795
    %v1292 = vpack.c.b16 %v804, %v796
    %v1293 = vpack.c.b16 %v805, %v797
    %v1294 = vpack.c.b16 %v806, %v798
    %v1295 = vpack.c.b16 %v807, %v799
    %v1296 = vpack.c.b16 %v808, %v800
    %v1297 = vpack.c.b16 %v809, %v801
    %v1298 = vpack.c.b16 %v818, %v810
    %v1299 = vpack.c.b16 %v819, %v811
    %v1300 = vpack.c.b16 %v820, %v812
    %v1301 = vpack.c.b16 %v821, %v813
    %v1302 = vpack.c.b16 %v822, %v814
    %v1303 = vpack.c.b16 %v823, %v815
    %v1304 = vpack.c.b16 %v824, %v816
    %v1305 = vpack.c.b16 %v825, %v817
    %v1306 = vpack.c.b16 %v834, %v826
    %v1307 = vpack.c.b16 %v835, %v827
    %v1308 = vpack.c.b16 %v836, %v828
    %v1309 = vpack.c.b16 %v837, %v829
    %v1310 = vpack.c.b16 %v838, %v830
    %v1311 = vpack.c.b16 %v839, %v831
    %v1312 = vpack.c.b16 %v840, %v832
    %v1313 = vpack.c.b16 %v841, %v833
    %v1314 = vpack.c.b16 %v850, %v842
    %v1315 = vpack.c.b16 %v851, %v843
    %v1316 = vpack.c.b16 %v852, %v844
    %v1317 = vpack.c.b16 %v853, %v845
    %v1318 = vpack.c.b16 %v854, %v846
    %v1319 = vpack.c.b16 %v855, %v847
    %v1320 = vpack.c.b16 %v856, %v848
    %v1321 = vpack.c.b16 %v857, %v849
    %v1322 = vpack.c.b16 %v866, %v858
    %v1323 = vpack.c.b16 %v867, %v859
    %v1324 = vpack.c.b16 %v868, %v860
    %v1325 = vpack.c.b16 %v869, %v861
    %v1326 = vpack.c.b16 %v870, %v862
    %v1327 = vpack.c.b16 %v871, %v863
    %v1328 = vpack.c.b16 %v872, %v864
    %v1329 = vpack.c.b16 %v873, %v865
    %v1330 = vpack.c.b16 %v882, %v874
    %v1331 = vpack.c.b16 %v883, %v875
    %v1332 = vpack.c.b16 %v884, %v876
    %v1333 = vpack.c.b16 %v885, %v877
    %v1334 = vpack.c.b16 %v886, %v878
    %v1335 = vpack.c.b16 %v887, %v879
    %v1336 = vpack.c.b16 %v888, %v880
    %v1337 = vpack.c.b16 %v889, %v881
    %v1338 = vpack.c.b16 %v898, %v890
    %v1339 = vpack.c.b16 %v899, %v891
    %v1340 = vpack.c.b16 %v900, %v892
    %v1341 = vpack.c.b16 %v901, %v893
    %v1342 = vpack.c.b16 %v902, %v894
    %v1343 = vpack.c.b16 %v903, %v895
    %v1344 = vpack.c.b16 %v904, %v896
    %v1345 = vpack.c.b16 %v905, %v897
    %v1346 = vpack.c.b16 %v914, %v906
    %v1347 = vpack.c.b16 %v915, %v907
    %v1348 = vpack.c.b16 %v916, %v908
    %v1349 = vpack.c.b16 %v917, %v909
    %v1350 = vpack.c.b16 %v918, %v910
    %v1351 = vpack.c.b16 %v919, %v911
    %v1352 = vpack.c.b16 %v920, %v912
    %v1353 = vpack.c.b16 %v921, %v913
    %v1354 = vpack.c.b16 %v930, %v922
    %v1355 = vpack.c.b16 %v931, %v923
    %v1356 = vpack.c.b16 %v932, %v924
    %v1357 = vpack.c.b16 %v933, %v925
    %v1358 = vpack.c.b16 %v934, %v926
    %v1359 = vpack.c.b16 %v935, %v927
    %v1360 = vpack.c.b16 %v936, %v928
    %v1361 = vpack.c.b16 %v937, %v929
    %v1362 = vpack.c.b16 %v946, %v938
    %v1363 = vpack.c.b16 %v947, %v939
    %v1364 = vpack.c.b16 %v948, %v940
    %v1365 = vpack.c.b16 %v949, %v941
    %v1366 = vpack.c.b16 %v950, %v942
    %v1367 = vpack.c.b16 %v951, %v943
    %v1368 = vpack.c.b16 %v952, %v944
    %v1369 = vpack.c.b16 %v953, %v945
    %v1370 = vpack.c.b16 %v962, %v954
    %v1371 = vpack.c.b16 %v963, %v955
    %v1372 = vpack.c.b16 %v964, %v956
    %v1373 = vpack.c.b16 %v965, %v957
    %v1374 = vpack.c.b16 %v966, %v958
    %v1375 = vpack.c.b16 %v967, %v959
    %v1376 = vpack.c.b16 %v968, %v960
    %v1377 = vpack.c.b16 %v969, %v961
    %v1378 = vpack.c.b16 %v978, %v970
    %v1379 = vpack.c.b16 %v979, %v971
    %v1380 = vpack.c.b16 %v980, %v972
    %v1381 = vpack.c.b16 %v981, %v973
    %v1382 = vpack.c.b16 %v982, %v974
    %v1383 = vpack.c.b16 %v983, %v975
    %v1384 = vpack.c.b16 %v984, %v976
    %v1385 = vpack.c.b16 %v985, %v977
    %v1386 = vpack.c.b16 %v994, %v986
    %v1387 = vpack.c.b16 %v995, %v987
    %v1388 = vpack.c.b16 %v996, %v988
    %v1389 = vpack.c.b16 %v997, %v989
    %v1390 = vpack.c.b16 %v998, %v990
    %v1391 = vpack.c.b16 %v999, %v991
    %v1392 = vpack.c.b16 %v1000, %v992
    %v1393 = vpack.c.b16 %v1001, %v993
    %v1394 = vpack.c.b16 %v1010, %v1002
    %v1395 = vpack.c.b16 %v1011, %v1003
    %v1396 = vpack.c.b16 %v1012, %v1004
    %v1397 = vpack.c.b16 %v1013, %v1005
    %v1398 = vpack.c.b16 %v1014, %v1006
    %v1399 = vpack.c.b16 %v1015, %v1007
    %v1400 = vpack.c.b16 %v1016, %v1008
    %v1401 = vpack.c.b16 %v1017, %v1009
    %v1402 = vpack.c.b16 %v1026, %v1018
    %v1403 = vpack.c.b16 %v1027, %v1019
    %v1404 = vpack.c.b16 %v1028, %v1020
    %v1405 = vpack.c.b16 %v1029, %v1021
    %v1406 = vpack.c.b16 %v1030, %v1022
    %v1407 = vpack.c.b16 %v1031, %v1023
    %v1408 = vpack.c.b16 %v1032, %v1024
    %v1409 = vpack.c.b16 %v1033, %v1025
    %v1410 = vpack.c.b16 %v1042, %v1034
    %v1411 = vpack.c.b16 %v1043, %v1035
    %v1412 = vpack.c.b16 %v1044, %v1036
    %v1413 = vpack.c.b16 %v1045, %v1037
    %v1414 = vpack.c.b16 %v1046, %v1038
    %v1415 = vpack.c.b16 %v1047, %v1039
    %v1416 = vpack.c.b16 %v1048, %v1040
    %v1417 = vpack.c.b16 %v1049, %v1041
    %v1418 = vpack.c.b16 %v1058, %v1050
    %v1419 = vpack.c.b16 %v1059, %v1051
    %v1420 = vpack.c.b16 %v1060, %v1052
    %v1421 = vpack.c.b16 %v1061, %v1053
    %v1422 = vpack.c.b16 %v1062, %v1054
    %v1423 = vpack.c.b16 %v1063, %v1055
    %v1424 = vpack.c.b16 %v1064, %v1056
    %v1425 = vpack.c.b16 %v1065, %v1057
    %v1426 = vpack.c.b16 %v1074, %v1066
    %v1427 = vpack.c.b16 %v1075, %v1067
    %v1428 = vpack.c.b16 %v1076, %v1068
    %v1429 = vpack.c.b16 %v1077, %v1069
    %v1430 = vpack.c.b16 %v1078, %v1070
    %v1431 = vpack.c.b16 %v1079, %v1071
    %v1432 = vpack.c.b16 %v1080, %v1072
    %v1433 = vpack.c.b16 %v1081, %v1073
    %v1434 = vpack.c.b16 %v1090, %v1082
    %v1435 = vpack.c.b16 %v1091, %v1083
    %v1436 = vpack.c.b16 %v1092, %v1084
    %v1437 = vpack.c.b16 %v1093, %v1085
    %v1438 = vpack.c.b16 %v1094, %v1086
    %v1439 = vpack.c.b16 %v1095, %v1087
    %v1440 = vpack.c.b16 %v1096, %v1088
    %v1441 = vpack.c.b16 %v1097, %v1089
    %v1442 = vpack.c.b16 %v1106, %v1098
    %v1443 = vpack.c.b16 %v1107, %v1099
    %v1444 = vpack.c.b16 %v1108, %v1100
    %v1445 = vpack.c.b16 %v1109, %v1101
    %v1446 = vpack.c.b16 %v1110, %v1102
    %v1447 = vpack.c.b16 %v1111, %v1103
    %v1448 = vpack.c.b16 %v1112, %v1104
    %v1449 = vpack.c.b16 %v1113, %v1105
    %v1450 = vpack.c.b16 %v1122, %v1114
    %v1451 = vpack.c.b16 %v1123, %v1115
    %v1452 = vpack.c.b16 %v1124, %v1116
    %v1453 = vpack.c.b16 %v1125, %v1117
    %v1454 = vpack.c.b16 %v1126, %v1118
    %v1455 = vpack.c.b16 %v1127, %v1119
    %v1456 = vpack.c.b16 %v1128, %v1120
    %v1457 = vpack.c.b16 %v1129, %v1121
    %v1458 = vpack.c.b16 %v1138, %v1130
    %v1459 = vpack.c.b16 %v1139, %v1131
    %v1460 = vpack.c.b16 %v1140, %v1132
    %v1461 = vpack.c.b16 %v1141, %v1133
    %v1462 = vpack.c.b16 %v1142, %v1134
    %v1463 = vpack.c.b16 %v1143, %v1135
    %v1464 = vpack.c.b16 %v1144, %v1136
    %v1465 = vpack.c.b16 %v1145, %v1137
    %v1466 = vpack.c.b16 %v1154, %v1146
    %v1467 = vpack.c.b16 %v1155, %v1147
    %v1468 = vpack.c.b16 %v1156, %v1148
    %v1469 = vpack.c.b16 %v1157, %v1149
    %v1470 = vpack.c.b16 %v1158, %v1150
    %v1471 = vpack.c.b16 %v1159, %v1151
    %v1472 = vpack.c.b16 %v1160, %v1152
    %v1473 = vpack.c.b16 %v1161, %v1153
    %v1474 = vpack.c.b16 %v1170, %v1162
    %v1475 = vpack.c.b16 %v1171, %v1163
    %v1476 = vpack.c.b16 %v1172, %v1164
    %v1477 = vpack.c.b16 %v1173, %v1165
    %v1478 = vpack.c.b16 %v1174, %v1166
    %v1479 = vpack.c.b16 %v1175, %v1167
    %v1480 = vpack.c.b16 %v1176, %v1168
    %v1481 = vpack.c.b16 %v1177, %v1169
    %v1482 = vpack.c.b16 %v1186, %v1178
    %v1483 = vpack.c.b16 %v1187, %v1179
    %v1484 = vpack.c.b16 %v1188, %v1180
    %v1485 = vpack.c.b16 %v1189, %v1181
    %v1486 = vpack.c.b16 %v1190, %v1182
    %v1487 = vpack.c.b16 %v1191, %v1183
    %v1488 = vpack.c.b16 %v1192, %v1184
    %v1489 = vpack.c.b16 %v1193, %v1185
    %v1490 = vpack.c.b16 %v1202, %v1194
    %v1491 = vpack.c.b16 %v1203, %v1195
    %v1492 = vpack.c.b16 %v1204, %v1196
    %v1493 = vpack.c.b16 %v1205, %v1197
    %v1494 = vpack.c.b16 %v1206, %v1198
    %v1495 = vpack.c.b16 %v1207, %v1199
    %v1496 = vpack.c.b16 %v1208, %v1200
    %v1497 = vpack.c.b16 %v1209, %v1201
    %v1498 = vpack.c.b16 %v1218, %v1210
    %v1499 = vpack.c.b16 %v1219, %v1211
    %v1500 = vpack.c.b16 %v1220, %v1212
    %v1501 = vpack.c.b16 %v1221, %v1213
    %v1502 = vpack.c.b16 %v1222, %v1214
    %v1503 = vpack.c.b16 %v1223, %v1215
    %v1504 = vpack.c.b16 %v1224, %v1216
    %v1505 = vpack.c.b16 %v1225, %v1217
    %v1506 = vpack.c.b16 %v1234, %v1226
    %v1507 = vpack.c.b16 %v1235, %v1227
    %v1508 = vpack.c.b16 %v1236, %v1228
    %v1509 = vpack.c.b16 %v1237, %v1229
    %v1510 = vpack.c.b16 %v1238, %v1230
    %v1511 = vpack.c.b16 %v1239, %v1231
    %v1512 = vpack.c.b16 %v1240, %v1232
    %v1513 = vpack.c.b16 %v1241, %v1233
    %v1514 = vpack.c.b16 %v1250, %v1242
    %v1515 = vpack.c.b16 %v1251, %v1243
    %v1516 = vpack.c.b16 %v1252, %v1244
    %v1517 = vpack.c.b16 %v1253, %v1245
    %v1518 = vpack.c.b16 %v1254, %v1246
    %v1519 = vpack.c.b16 %v1255, %v1247
    %v1520 = vpack.c.b16 %v1256, %v1248
    %v1521 = vpack.c.b16 %v1257, %v1249
    %v1522 = vpack.c.b16 %v1266, %v1258
    %v1523 = vpack.c.b16 %v1267, %v1259
    %v1524 = vpack.c.b16 %v1268, %v1260
    %v1525 = vpack.c.b16 %v1269, %v1261
    %v1526 = vpack.c.b16 %v1270, %v1262
    %v1527 = vpack.c.b16 %v1271, %v1263
    %v1528 = vpack.c.b16 %v1272, %v1264
    %v1529 = vpack.c.b16 %v1273, %v1265
    %1786 = vmatprep.subr.bf16.mxu0 %v1275
    %1787 = vmatpush1.bf16.msra.mxu0 %v1274
    %1788 = vmatprep.subr.bf16.mxu0 %v1283
    %1789 = vmatpush1.bf16.msra.mxu0 %v1282
    %1790 = vmatprep.subr.bf16.mxu0 %v1291
    %1791 = vmatpush1.bf16.msra.mxu0 %v1290
    %1792 = vmatprep.subr.bf16.mxu0 %v1299
    %1793 = vmatpush1.bf16.msra.mxu0 %v1298
    %1794 = vmatprep.subr.bf16.mxu0 %v1307
    %1795 = vmatpush1.bf16.msra.mxu0 %v1306
    %1796 = vmatprep.subr.bf16.mxu0 %v1315
    %1797 = vmatpush1.bf16.msra.mxu0 %v1314
    %1798 = vmatprep.subr.bf16.mxu0 %v1323
    %1799 = vmatpush1.bf16.msra.mxu0 %v1322
    %1800 = vmatprep.subr.bf16.mxu0 %v1331
    %1801 = vmatpush1.bf16.msra.mxu0 %v1330
    %1802 = vmatprep.subr.bf16.mxu0 %v1339
    %1803 = vmatpush1.bf16.msra.mxu0 %v1338
    %1804 = vmatprep.subr.bf16.mxu0 %v1347
    %1805 = vmatpush1.bf16.msra.mxu0 %v1346
    %1806 = vmatprep.subr.bf16.mxu0 %v1355
    %1807 = vmatpush1.bf16.msra.mxu0 %v1354
    %1808 = vmatprep.subr.bf16.mxu0 %v1363
    %1809 = vmatpush1.bf16.msra.mxu0 %v1362
    %1810 = vmatprep.subr.bf16.mxu0 %v1371
    %1811 = vmatpush1.bf16.msra.mxu0 %v1370
    %1812 = vmatprep.subr.bf16.mxu0 %v1379
    %1813 = vmatpush1.bf16.msra.mxu0 %v1378
    %1814 = vmatprep.subr.bf16.mxu0 %v1387
    %1815 = vmatpush1.bf16.msra.mxu0 %v1386
    %1816 = vmatprep.subr.bf16.mxu0 %v1395
    %1817 = vmatpush1.bf16.msra.mxu0 %v1394
    %1818 = vmatprep.mubr.bf16.mxu0 %v443
    %1819 = vmatmul.mubr.bf16.gmra.mrb[0].mxu0 %v442
    %v1820 = vpop.f32.mrb[0].mxu0
    %v1821 = vadd.f32 %v309, %v1820
    %v1822 = vpop.f32.mrb[0].mxu0
    %v1823 = vadd.f32 %v313, %v1822
    %v1824 = vpop.f32.mrb[0].mxu0
    %v1825 = vadd.f32 %v309, %v1824
    %v1826 = vpop.f32.mrb[0].mxu0
    %v1827 = vadd.f32 %v313, %v1826
    %1828 = vmatprep.mubr.bf16.mxu0 %v447
    %1829 = vmatmul.mubr.bf16.gmra.mrb[0].mxu0 %v446
    %v1830 = vpop.f32.mrb[0].mxu0
    %v1831 = vadd.f32 %v309, %v1830
    %v1832 = vpop.f32.mrb[0].mxu0
    %v1833 = vadd.f32 %v313, %v1832
    %v1834 = vpop.f32.mrb[0].mxu0
    %v1835 = vadd.f32 %v309, %v1834
    %v1836 = vpop.f32.mrb[0].mxu0
    %v1837 = vadd.f32 %v313, %v1836
    %1838 = vmatprep.mubr.bf16.mxu0 %v451
    %1839 = vmatmul.mubr.bf16.gmra.mrb[0].mxu0 %v450
    %v1840 = vpop.f32.mrb[0].mxu0
    %v1841 = vadd.f32 %v309, %v1840
    %v1842 = vpop.f32.mrb[0].mxu0
    %v1843 = vadd.f32 %v313, %v1842
    %v1844 = vpop.f32.mrb[0].mxu0
    %v1845 = vadd.f32 %v309, %v1844
    %v1846 = vpop.f32.mrb[0].mxu0
    %v1847 = vadd.f32 %v313, %v1846
    %1848 = vmatprep.mubr.bf16.mxu0 %v455
    %1849 = vmatmul.mubr.bf16.gmra.mrb[0].mxu0 %v454
    %v1850 = vpop.f32.mrb[0].mxu0
    %v1851 = vadd.f32 %v309, %v1850
    %v1852 = vpop.f32.mrb[0].mxu0
    %v1853 = vadd.f32 %v313, %v1852
    %v1854 = vpop.f32.mrb[0].mxu0
    %v1855 = vadd.f32 %v309, %v1854
    %v1856 = vpop.f32.mrb[0].mxu0
    %v1857 = vadd.f32 %v313, %v1856
    %1858 = vmatprep.mubr.bf16.mxu0 %v459
    %1859 = vmatmul.mubr.bf16.gmra.mrb[0].mxu0 %v458
    %v1860 = vpop.f32.mrb[0].mxu0
    %v1861 = vadd.f32 %v309, %v1860
    %v1862 = vpop.f32.mrb[0].mxu0
    %v1863 = vadd.f32 %v313, %v1862
    %v1864 = vpop.f32.mrb[0].mxu0
    %v1865 = vadd.f32 %v309, %v1864
    %v1866 = vpop.f32.mrb[0].mxu0
    %v1867 = vadd.f32 %v313, %v1866
    %1868 = vmatprep.mubr.bf16.mxu0 %v463
    %1869 = vmatmul.mubr.bf16.gmra.mrb[0].mxu0 %v462
    %v1870 = vpop.f32.mrb[0].mxu0
    %v1871 = vadd.f32 %v309, %v1870
    %v1872 = vpop.f32.mrb[0].mxu0
    %v1873 = vadd.f32 %v313, %v1872
    %v1874 = vpop.f32.mrb[0].mxu0
    %v1875 = vadd.f32 %v309, %v1874
    %v1876 = vpop.f32.mrb[0].mxu0
    %v1877 = vadd.f32 %v313, %v1876
    %1878 = vmatprep.mubr.bf16.mxu0 %v467
    %1879 = vmatmul.mubr.bf16.gmra.mrb[0].mxu0 %v466
    %v1880 = vpop.f32.mrb[0].mxu0
    %v1881 = vadd.f32 %v309, %v1880
    %v1882 = vpop.f32.mrb[0].mxu0
    %v1883 = vadd.f32 %v313, %v1882
    %v1884 = vpop.f32.mrb[0].mxu0
    %v1885 = vadd.f32 %v309, %v1884
    %v1886 = vpop.f32.mrb[0].mxu0
    %v1887 = vadd.f32 %v313, %v1886
    %1888 = vmatprep.mubr.bf16.mxu0 %v471
    %1889 = vmatmul.mubr.bf16.gmra.mrb[0].mxu0 %v470
    %v1890 = vpop.f32.mrb[0].mxu0
    %v1891 = vadd.f32 %v309, %v1890
    %v1892 = vpop.f32.mrb[0].mxu0
    %v1893 = vadd.f32 %v313, %v1892
    %v1894 = vpop.f32.mrb[0].mxu0
    %v1895 = vadd.f32 %v309, %v1894
    %v1896 = vpop.f32.mrb[0].mxu0
    %v1897 = vadd.f32 %v313, %v1896
    %1898 = vdwg.mxu0
    %1899 = vmatprep.subr.bf16.mxu0 %v1403
    %1900 = vmatpush1.bf16.msra.mxu0 %v1402
    %1901 = vmatprep.subr.bf16.mxu0 %v1411
    %1902 = vmatpush1.bf16.msra.mxu0 %v1410
    %1903 = vmatprep.subr.bf16.mxu0 %v1419
    %1904 = vmatpush1.bf16.msra.mxu0 %v1418
    %1905 = vmatprep.subr.bf16.mxu0 %v1427
    %1906 = vmatpush1.bf16.msra.mxu0 %v1426
    %1907 = vmatprep.subr.bf16.mxu0 %v1435
    %1908 = vmatpush1.bf16.msra.mxu0 %v1434
    %1909 = vmatprep.subr.bf16.mxu0 %v1443
    %1910 = vmatpush1.bf16.msra.mxu0 %v1442
    %1911 = vmatprep.subr.bf16.mxu0 %v1451
    %1912 = vmatpush1.bf16.msra.mxu0 %v1450
    %1913 = vmatprep.subr.bf16.mxu0 %v1459
    %1914 = vmatpush1.bf16.msra.mxu0 %v1458
    %1915 = vmatprep.subr.bf16.mxu0 %v1467
    %1916 = vmatpush1.bf16.msra.mxu0 %v1466
    %1917 = vmatprep.subr.bf16.mxu0 %v1475
    %1918 = vmatpush1.bf16.msra.mxu0 %v1474
    %1919 = vmatprep.subr.bf16.mxu0 %v1483
    %1920 = vmatpush1.bf16.msra.mxu0 %v1482
    %1921 = vmatprep.subr.bf16.mxu0 %v1491
    %1922 = vmatpush1.bf16.msra.mxu0 %v1490
    %1923 = vmatprep.subr.bf16.mxu0 %v1499
    %1924 = vmatpush1.bf16.msra.mxu0 %v1498
    %1925 = vmatprep.subr.bf16.mxu0 %v1507
    %1926 = vmatpush1.bf16.msra.mxu0 %v1506
    %1927 = vmatprep.subr.bf16.mxu0 %v1515
    %1928 = vmatpush1.bf16.msra.mxu0 %v1514
    %1929 = vmatprep.subr.bf16.mxu0 %v1523
    %1930 = vmatpush1.bf16.msra.mxu0 %v1522
    %1931 = vmatprep.mubr.bf16.mxu0 %v445
    %1932 = vmatmul.mubr.bf16.gmra.mrb[0].mxu0 %v444
    %v1933 = vpop.f32.mrb[0].mxu0
    %v1934 = vadd.f32 %v1821, %v1933
    %v1935 = vpop.f32.mrb[0].mxu0
    %v1936 = vadd.f32 %v1823, %v1935
    %v1937 = vpop.f32.mrb[0].mxu0
    %v1938 = vadd.f32 %v1825, %v1937
    %v1939 = vpop.f32.mrb[0].mxu0
    %v1940 = vadd.f32 %v1827, %v1939
    %1941 = vmatprep.mubr.bf16.mxu0 %v449
    %1942 = vmatmul.mubr.bf16.gmra.mrb[0].mxu0 %v448
    %v1943 = vpop.f32.mrb[0].mxu0
    %v1944 = vadd.f32 %v1831, %v1943
    %v1945 = vpop.f32.mrb[0].mxu0
    %v1946 = vadd.f32 %v1833, %v1945
    %v1947 = vpop.f32.mrb[0].mxu0
    %v1948 = vadd.f32 %v1835, %v1947
    %v1949 = vpop.f32.mrb[0].mxu0
    %v1950 = vadd.f32 %v1837, %v1949
    %1951 = vmatprep.mubr.bf16.mxu0 %v453
    %1952 = vmatmul.mubr.bf16.gmra.mrb[0].mxu0 %v452
    %v1953 = vpop.f32.mrb[0].mxu0
    %v1954 = vadd.f32 %v1841, %v1953
    %v1955 = vpop.f32.mrb[0].mxu0
    %v1956 = vadd.f32 %v1843, %v1955
    %v1957 = vpop.f32.mrb[0].mxu0
    %v1958 = vadd.f32 %v1845, %v1957
    %v1959 = vpop.f32.mrb[0].mxu0
    %v1960 = vadd.f32 %v1847, %v1959
    %1961 = vmatprep.mubr.bf16.mxu0 %v457
    %1962 = vmatmul.mubr.bf16.gmra.mrb[0].mxu0 %v456
    %v1963 = vpop.f32.mrb[0].mxu0
    %v1964 = vadd.f32 %v1851, %v1963
    %v1965 = vpop.f32.mrb[0].mxu0
    %v1966 = vadd.f32 %v1853, %v1965
    %v1967 = vpop.f32.mrb[0].mxu0
    %v1968 = vadd.f32 %v1855, %v1967
    %v1969 = vpop.f32.mrb[0].mxu0
    %v1970 = vadd.f32 %v1857, %v1969
    %1971 = vmatprep.mubr.bf16.mxu0 %v461
    %1972 = vmatmul.mubr.bf16.gmra.mrb[0].mxu0 %v460
    %v1973 = vpop.f32.mrb[0].mxu0
    %v1974 = vadd.f32 %v1861, %v1973
    %v1975 = vpop.f32.mrb[0].mxu0
    %v1976 = vadd.f32 %v1863, %v1975
    %v1977 = vpop.f32.mrb[0].mxu0
    %v1978 = vadd.f32 %v1865, %v1977
    %v1979 = vpop.f32.mrb[0].mxu0
    %v1980 = vadd.f32 %v1867, %v1979
    %1981 = vmatprep.mubr.bf16.mxu0 %v465
    %1982 = vmatmul.mubr.bf16.gmra.mrb[0].mxu0 %v464
    %v1983 = vpop.f32.mrb[0].mxu0
    %v1984 = vadd.f32 %v1871, %v1983
    %v1985 = vpop.f32.mrb[0].mxu0
    %v1986 = vadd.f32 %v1873, %v1985
    %v1987 = vpop.f32.mrb[0].mxu0
    %v1988 = vadd.f32 %v1875, %v1987
    %v1989 = vpop.f32.mrb[0].mxu0
    %v1990 = vadd.f32 %v1877, %v1989
    %1991 = vmatprep.mubr.bf16.mxu0 %v469
    %1992 = vmatmul.mubr.bf16.gmra.mrb[0].mxu0 %v468
    %v1993 = vpop.f32.mrb[0].mxu0
    %v1994 = vadd.f32 %v1881, %v1993
    %v1995 = vpop.f32.mrb[0].mxu0
    %v1996 = vadd.f32 %v1883, %v1995
    %v1997 = vpop.f32.mrb[0].mxu0
    %v1998 = vadd.f32 %v1885, %v1997
    %v1999 = vpop.f32.mrb[0].mxu0
    %v2000 = vadd.f32 %v1887, %v1999
    %2001 = vmatprep.mubr.bf16.mxu0 %v473
    %2002 = vmatmul.mubr.bf16.gmra.mrb[0].mxu0 %v472
    %v2003 = vpop.f32.mrb[0].mxu0
    %v2004 = vadd.f32 %v1891, %v2003
    %v2005 = vpop.f32.mrb[0].mxu0
    %v2006 = vadd.f32 %v1893, %v2005
    %v2007 = vpop.f32.mrb[0].mxu0
    %v2008 = vadd.f32 %v1895, %v2007
    %v2009 = vpop.f32.mrb[0].mxu0
    %v2010 = vadd.f32 %v1897, %v2009
    %2011 = vdwg.mxu0
    %2012 = vmatprep.subr.bf16.mxu0 %v1277
    %2013 = vmatpush1.bf16.msra.mxu0 %v1276
    %2014 = vmatprep.subr.bf16.mxu0 %v1285
    %2015 = vmatpush1.bf16.msra.mxu0 %v1284
    %2016 = vmatprep.subr.bf16.mxu0 %v1293
    %2017 = vmatpush1.bf16.msra.mxu0 %v1292
    %2018 = vmatprep.subr.bf16.mxu0 %v1301
    %2019 = vmatpush1.bf16.msra.mxu0 %v1300
    %2020 = vmatprep.subr.bf16.mxu0 %v1309
    %2021 = vmatpush1.bf16.msra.mxu0 %v1308
    %2022 = vmatprep.subr.bf16.mxu0 %v1317
    %2023 = vmatpush1.bf16.msra.mxu0 %v1316
    %2024 = vmatprep.subr.bf16.mxu0 %v1325
    %2025 = vmatpush1.bf16.msra.mxu0 %v1324
    %2026 = vmatprep.subr.bf16.mxu0 %v1333
    %2027 = vmatpush1.bf16.msra.mxu0 %v1332
    %2028 = vmatprep.subr.bf16.mxu0 %v1341
    %2029 = vmatpush1.bf16.msra.mxu0 %v1340
    %2030 = vmatprep.subr.bf16.mxu0 %v1349
    %2031 = vmatpush1.bf16.msra.mxu0 %v1348
    %2032 = vmatprep.subr.bf16.mxu0 %v1357
    %2033 = vmatpush1.bf16.msra.mxu0 %v1356
    %2034 = vmatprep.subr.bf16.mxu0 %v1365
    %2035 = vmatpush1.bf16.msra.mxu0 %v1364
    %2036 = vmatprep.subr.bf16.mxu0 %v1373
    %2037 = vmatpush1.bf16.msra.mxu0 %v1372
    %2038 = vmatprep.subr.bf16.mxu0 %v1381
    %2039 = vmatpush1.bf16.msra.mxu0 %v1380
    %2040 = vmatprep.subr.bf16.mxu0 %v1389
    %2041 = vmatpush1.bf16.msra.mxu0 %v1388
    %2042 = vmatprep.subr.bf16.mxu0 %v1397
    %2043 = vmatpush1.bf16.msra.mxu0 %v1396
    %2044 = vmatprep.mubr.bf16.mxu0 %v443
    %2045 = vmatmul.mubr.bf16.gmra.mrb[0].mxu0 %v442
    %v2046 = vpop.f32.mrb[0].mxu0
    %v2047 = vadd.f32 %v317, %v2046
    %v2048 = vpop.f32.mrb[0].mxu0
    %v2049 = vadd.f32 %v321, %v2048
    %v2050 = vpop.f32.mrb[0].mxu0
    %v2051 = vadd.f32 %v317, %v2050
    %v2052 = vpop.f32.mrb[0].mxu0
    %v2053 = vadd.f32 %v321, %v2052
    %2054 = vmatprep.mubr.bf16.mxu0 %v447
    %2055 = vmatmul.mubr.bf16.gmra.mrb[0].mxu0 %v446
    %v2056 = vpop.f32.mrb[0].mxu0
    %v2057 = vadd.f32 %v317, %v2056
    %v2058 = vpop.f32.mrb[0].mxu0
    %v2059 = vadd.f32 %v321, %v2058
    %v2060 = vpop.f32.mrb[0].mxu0
    %v2061 = vadd.f32 %v317, %v2060
    %v2062 = vpop.f32.mrb[0].mxu0
    %v2063 = vadd.f32 %v321, %v2062
    %2064 = vmatprep.mubr.bf16.mxu0 %v451
    %2065 = vmatmul.mubr.bf16.gmra.mrb[0].mxu0 %v450
    %v2066 = vpop.f32.mrb[0].mxu0
    %v2067 = vadd.f32 %v317, %v2066
    %v2068 = vpop.f32.mrb[0].mxu0
    %v2069 = vadd.f32 %v321, %v2068
    %v2070 = vpop.f32.mrb[0].mxu0
    %v2071 = vadd.f32 %v317, %v2070
    %v2072 = vpop.f32.mrb[0].mxu0
    %v2073 = vadd.f32 %v321, %v2072
    %2074 = vmatprep.mubr.bf16.mxu0 %v455
    %2075 = vmatmul.mubr.bf16.gmra.mrb[0].mxu0 %v454
    %v2076 = vpop.f32.mrb[0].mxu0
    %v2077 = vadd.f32 %v317, %v2076
    %v2078 = vpop.f32.mrb[0].mxu0
    %v2079 = vadd.f32 %v321, %v2078
    %v2080 = vpop.f32.mrb[0].mxu0
    %v2081 = vadd.f32 %v317, %v2080
    %v2082 = vpop.f32.mrb[0].mxu0
    %v2083 = vadd.f32 %v321, %v2082
    %2084 = vmatprep.mubr.bf16.mxu0 %v459
    %2085 = vmatmul.mubr.bf16.gmra.mrb[0].mxu0 %v458
    %v2086 = vpop.f32.mrb[0].mxu0
    %v2087 = vadd.f32 %v317, %v2086
    %v2088 = vpop.f32.mrb[0].mxu0
    %v2089 = vadd.f32 %v321, %v2088
    %v2090 = vpop.f32.mrb[0].mxu0
    %v2091 = vadd.f32 %v317, %v2090
    %v2092 = vpop.f32.mrb[0].mxu0
    %v2093 = vadd.f32 %v321, %v2092
    %2094 = vmatprep.mubr.bf16.mxu0 %v463
    %2095 = vmatmul.mubr.bf16.gmra.mrb[0].mxu0 %v462
    %v2096 = vpop.f32.mrb[0].mxu0
    %v2097 = vadd.f32 %v317, %v2096
    %v2098 = vpop.f32.mrb[0].mxu0
    %v2099 = vadd.f32 %v321, %v2098
    %v2100 = vpop.f32.mrb[0].mxu0
    %v2101 = vadd.f32 %v317, %v2100
    %v2102 = vpop.f32.mrb[0].mxu0
    %v2103 = vadd.f32 %v321, %v2102
    %2104 = vmatprep.mubr.bf16.mxu0 %v467
    %2105 = vmatmul.mubr.bf16.gmra.mrb[0].mxu0 %v466
    %v2106 = vpop.f32.mrb[0].mxu0
    %v2107 = vadd.f32 %v317, %v2106
    %v2108 = vpop.f32.mrb[0].mxu0
    %v2109 = vadd.f32 %v321, %v2108
    %v2110 = vpop.f32.mrb[0].mxu0
    %v2111 = vadd.f32 %v317, %v2110
    %v2112 = vpop.f32.mrb[0].mxu0
    %v2113 = vadd.f32 %v321, %v2112
    %2114 = vmatprep.mubr.bf16.mxu0 %v471
    %2115 = vmatmul.mubr.bf16.gmra.mrb[0].mxu0 %v470
    %v2116 = vpop.f32.mrb[0].mxu0
    %v2117 = vadd.f32 %v317, %v2116
    %v2118 = vpop.f32.mrb[0].mxu0
    %v2119 = vadd.f32 %v321, %v2118
    %v2120 = vpop.f32.mrb[0].mxu0
    %v2121 = vadd.f32 %v317, %v2120
    %v2122 = vpop.f32.mrb[0].mxu0
    %v2123 = vadd.f32 %v321, %v2122
    %2124 = vdwg.mxu0
    %2125 = vmatprep.subr.bf16.mxu0 %v1405
    %2126 = vmatpush1.bf16.msra.mxu0 %v1404
    %2127 = vmatprep.subr.bf16.mxu0 %v1413
    %2128 = vmatpush1.bf16.msra.mxu0 %v1412
    %2129 = vmatprep.subr.bf16.mxu0 %v1421
    %2130 = vmatpush1.bf16.msra.mxu0 %v1420
    %2131 = vmatprep.subr.bf16.mxu0 %v1429
    %2132 = vmatpush1.bf16.msra.mxu0 %v1428
    %2133 = vmatprep.subr.bf16.mxu0 %v1437
    %2134 = vmatpush1.bf16.msra.mxu0 %v1436
    %2135 = vmatprep.subr.bf16.mxu0 %v1445
    %2136 = vmatpush1.bf16.msra.mxu0 %v1444
    %2137 = vmatprep.subr.bf16.mxu0 %v1453
    %2138 = vmatpush1.bf16.msra.mxu0 %v1452
    %2139 = vmatprep.subr.bf16.mxu0 %v1461
    %2140 = vmatpush1.bf16.msra.mxu0 %v1460
    %2141 = vmatprep.subr.bf16.mxu0 %v1469
    %2142 = vmatpush1.bf16.msra.mxu0 %v1468
    %2143 = vmatprep.subr.bf16.mxu0 %v1477
    %2144 = vmatpush1.bf16.msra.mxu0 %v1476
    %2145 = vmatprep.subr.bf16.mxu0 %v1485
    %2146 = vmatpush1.bf16.msra.mxu0 %v1484
    %2147 = vmatprep.subr.bf16.mxu0 %v1493
    %2148 = vmatpush1.bf16.msra.mxu0 %v1492
    %2149 = vmatprep.subr.bf16.mxu0 %v1501
    %2150 = vmatpush1.bf16.msra.mxu0 %v1500
    %2151 = vmatprep.subr.bf16.mxu0 %v1509
    %2152 = vmatpush1.bf16.msra.mxu0 %v1508
    %2153 = vmatprep.subr.bf16.mxu0 %v1517
    %2154 = vmatpush1.bf16.msra.mxu0 %v1516
    %2155 = vmatprep.subr.bf16.mxu0 %v1525
    %2156 = vmatpush1.bf16.msra.mxu0 %v1524
    %2157 = vmatprep.mubr.bf16.mxu0 %v445
    %2158 = vmatmul.mubr.bf16.gmra.mrb[0].mxu0 %v444
    %v2159 = vpop.f32.mrb[0].mxu0
    %v2160 = vadd.f32 %v2047, %v2159
    %v2161 = vpop.f32.mrb[0].mxu0
    %v2162 = vadd.f32 %v2049, %v2161
    %v2163 = vpop.f32.mrb[0].mxu0
    %v2164 = vadd.f32 %v2051, %v2163
    %v2165 = vpop.f32.mrb[0].mxu0
    %v2166 = vadd.f32 %v2053, %v2165
    %2167 = vmatprep.mubr.bf16.mxu0 %v449
    %2168 = vmatmul.mubr.bf16.gmra.mrb[0].mxu0 %v448
    %v2169 = vpop.f32.mrb[0].mxu0
    %v2170 = vadd.f32 %v2057, %v2169
    %v2171 = vpop.f32.mrb[0].mxu0
    %v2172 = vadd.f32 %v2059, %v2171
    %v2173 = vpop.f32.mrb[0].mxu0
    %v2174 = vadd.f32 %v2061, %v2173
    %v2175 = vpop.f32.mrb[0].mxu0
    %v2176 = vadd.f32 %v2063, %v2175
    %2177 = vmatprep.mubr.bf16.mxu0 %v453
    %2178 = vmatmul.mubr.bf16.gmra.mrb[0].mxu0 %v452
    %v2179 = vpop.f32.mrb[0].mxu0
    %v2180 = vadd.f32 %v2067, %v2179
    %v2181 = vpop.f32.mrb[0].mxu0
    %v2182 = vadd.f32 %v2069, %v2181
    %v2183 = vpop.f32.mrb[0].mxu0
    %v2184 = vadd.f32 %v2071, %v2183
    %v2185 = vpop.f32.mrb[0].mxu0
    %v2186 = vadd.f32 %v2073, %v2185
    %2187 = vmatprep.mubr.bf16.mxu0 %v457
    %2188 = vmatmul.mubr.bf16.gmra.mrb[0].mxu0 %v456
    %v2189 = vpop.f32.mrb[0].mxu0
    %v2190 = vadd.f32 %v2077, %v2189
    %v2191 = vpop.f32.mrb[0].mxu0
    %v2192 = vadd.f32 %v2079, %v2191
    %v2193 = vpop.f32.mrb[0].mxu0
    %v2194 = vadd.f32 %v2081, %v2193
    %v2195 = vpop.f32.mrb[0].mxu0
    %v2196 = vadd.f32 %v2083, %v2195
    %2197 = vmatprep.mubr.bf16.mxu0 %v461
    %2198 = vmatmul.mubr.bf16.gmra.mrb[0].mxu0 %v460
    %v2199 = vpop.f32.mrb[0].mxu0
    %v2200 = vadd.f32 %v2087, %v2199
    %v2201 = vpop.f32.mrb[0].mxu0
    %v2202 = vadd.f32 %v2089, %v2201
    %v2203 = vpop.f32.mrb[0].mxu0
    %v2204 = vadd.f32 %v2091, %v2203
    %v2205 = vpop.f32.mrb[0].mxu0
    %v2206 = vadd.f32 %v2093, %v2205
    %2207 = vmatprep.mubr.bf16.mxu0 %v465
    %2208 = vmatmul.mubr.bf16.gmra.mrb[0].mxu0 %v464
    %v2209 = vpop.f32.mrb[0].mxu0
    %v2210 = vadd.f32 %v2097, %v2209
    %v2211 = vpop.f32.mrb[0].mxu0
    %v2212 = vadd.f32 %v2099, %v2211
    %v2213 = vpop.f32.mrb[0].mxu0
    %v2214 = vadd.f32 %v2101, %v2213
    %v2215 = vpop.f32.mrb[0].mxu0
    %v2216 = vadd.f32 %v2103, %v2215
    %2217 = vmatprep.mubr.bf16.mxu0 %v469
    %2218 = vmatmul.mubr.bf16.gmra.mrb[0].mxu0 %v468
    %v2219 = vpop.f32.mrb[0].mxu0
    %v2220 = vadd.f32 %v2107, %v2219
    %v2221 = vpop.f32.mrb[0].mxu0
    %v2222 = vadd.f32 %v2109, %v2221
    %v2223 = vpop.f32.mrb[0].mxu0
    %v2224 = vadd.f32 %v2111, %v2223
    %v2225 = vpop.f32.mrb[0].mxu0
    %v2226 = vadd.f32 %v2113, %v2225
    %2227 = vmatprep.mubr.bf16.mxu0 %v473
    %2228 = vmatmul.mubr.bf16.gmra.mrb[0].mxu0 %v472
    %v2229 = vpop.f32.mrb[0].mxu0
    %v2230 = vadd.f32 %v2117, %v2229
    %v2231 = vpop.f32.mrb[0].mxu0
    %v2232 = vadd.f32 %v2119, %v2231
    %v2233 = vpop.f32.mrb[0].mxu0
    %v2234 = vadd.f32 %v2121, %v2233
    %v2235 = vpop.f32.mrb[0].mxu0
    %v2236 = vadd.f32 %v2123, %v2235
    %2237 = vdwg.mxu0
    %2238 = vmatprep.subr.bf16.mxu0 %v1279
    %2239 = vmatpush1.bf16.msra.mxu0 %v1278
    %2240 = vmatprep.subr.bf16.mxu0 %v1287
    %2241 = vmatpush1.bf16.msra.mxu0 %v1286
    %2242 = vmatprep.subr.bf16.mxu0 %v1295
    %2243 = vmatpush1.bf16.msra.mxu0 %v1294
    %2244 = vmatprep.subr.bf16.mxu0 %v1303
    %2245 = vmatpush1.bf16.msra.mxu0 %v1302
    %2246 = vmatprep.subr.bf16.mxu0 %v1311
    %2247 = vmatpush1.bf16.msra.mxu0 %v1310
    %2248 = vmatprep.subr.bf16.mxu0 %v1319
    %2249 = vmatpush1.bf16.msra.mxu0 %v1318
    %2250 = vmatprep.subr.bf16.mxu0 %v1327
    %2251 = vmatpush1.bf16.msra.mxu0 %v1326
    %2252 = vmatprep.subr.bf16.mxu0 %v1335
    %2253 = vmatpush1.bf16.msra.mxu0 %v1334
    %2254 = vmatprep.subr.bf16.mxu0 %v1343
    %2255 = vmatpush1.bf16.msra.mxu0 %v1342
    %2256 = vmatprep.subr.bf16.mxu0 %v1351
    %2257 = vmatpush1.bf16.msra.mxu0 %v1350
    %2258 = vmatprep.subr.bf16.mxu0 %v1359
    %2259 = vmatpush1.bf16.msra.mxu0 %v1358
    %2260 = vmatprep.subr.bf16.mxu0 %v1367
    %2261 = vmatpush1.bf16.msra.mxu0 %v1366
    %2262 = vmatprep.subr.bf16.mxu0 %v1375
    %2263 = vmatpush1.bf16.msra.mxu0 %v1374
    %2264 = vmatprep.subr.bf16.mxu0 %v1383
    %2265 = vmatpush1.bf16.msra.mxu0 %v1382
    %2266 = vmatprep.subr.bf16.mxu0 %v1391
    %2267 = vmatpush1.bf16.msra.mxu0 %v1390
    %2268 = vmatprep.subr.bf16.mxu0 %v1399
    %2269 = vmatpush1.bf16.msra.mxu0 %v1398
    %2270 = vmatprep.mubr.bf16.mxu0 %v443
    %2271 = vmatmul.mubr.bf16.gmra.mrb[0].mxu0 %v442
    %v2272 = vpop.f32.mrb[0].mxu0
    %v2273 = vadd.f32 %v325, %v2272
    %v2274 = vpop.f32.mrb[0].mxu0
    %v2275 = vadd.f32 %v329, %v2274
    %v2276 = vpop.f32.mrb[0].mxu0
    %v2277 = vadd.f32 %v325, %v2276
    %v2278 = vpop.f32.mrb[0].mxu0
    %v2279 = vadd.f32 %v329, %v2278
    %2280 = vmatprep.mubr.bf16.mxu0 %v447
    %2281 = vmatmul.mubr.bf16.gmra.mrb[0].mxu0 %v446
    %v2282 = vpop.f32.mrb[0].mxu0
    %v2283 = vadd.f32 %v325, %v2282
    %v2284 = vpop.f32.mrb[0].mxu0
    %v2285 = vadd.f32 %v329, %v2284
    %v2286 = vpop.f32.mrb[0].mxu0
    %v2287 = vadd.f32 %v325, %v2286
    %v2288 = vpop.f32.mrb[0].mxu0
    %v2289 = vadd.f32 %v329, %v2288
    %2290 = vmatprep.mubr.bf16.mxu0 %v451
    %2291 = vmatmul.mubr.bf16.gmra.mrb[0].mxu0 %v450
    %v2292 = vpop.f32.mrb[0].mxu0
    %v2293 = vadd.f32 %v325, %v2292
    %v2294 = vpop.f32.mrb[0].mxu0
    %v2295 = vadd.f32 %v329, %v2294
    %v2296 = vpop.f32.mrb[0].mxu0
    %v2297 = vadd.f32 %v325, %v2296
    %v2298 = vpop.f32.mrb[0].mxu0
    %v2299 = vadd.f32 %v329, %v2298
    %2300 = vmatprep.mubr.bf16.mxu0 %v455
    %2301 = vmatmul.mubr.bf16.gmra.mrb[0].mxu0 %v454
    %v2302 = vpop.f32.mrb[0].mxu0
    %v2303 = vadd.f32 %v325, %v2302
    %v2304 = vpop.f32.mrb[0].mxu0
    %v2305 = vadd.f32 %v329, %v2304
    %v2306 = vpop.f32.mrb[0].mxu0
    %v2307 = vadd.f32 %v325, %v2306
    %v2308 = vpop.f32.mrb[0].mxu0
    %v2309 = vadd.f32 %v329, %v2308
    %2310 = vmatprep.mubr.bf16.mxu0 %v459
    %2311 = vmatmul.mubr.bf16.gmra.mrb[0].mxu0 %v458
    %v2312 = vpop.f32.mrb[0].mxu0
    %v2313 = vadd.f32 %v325, %v2312
    %v2314 = vpop.f32.mrb[0].mxu0
    %v2315 = vadd.f32 %v329, %v2314
    %v2316 = vpop.f32.mrb[0].mxu0
    %v2317 = vadd.f32 %v325, %v2316
    %v2318 = vpop.f32.mrb[0].mxu0
    %v2319 = vadd.f32 %v329, %v2318
    %2320 = vmatprep.mubr.bf16.mxu0 %v463
    %2321 = vmatmul.mubr.bf16.gmra.mrb[0].mxu0 %v462
    %v2322 = vpop.f32.mrb[0].mxu0
    %v2323 = vadd.f32 %v325, %v2322
    %v2324 = vpop.f32.mrb[0].mxu0
    %v2325 = vadd.f32 %v329, %v2324
    %v2326 = vpop.f32.mrb[0].mxu0
    %v2327 = vadd.f32 %v325, %v2326
    %v2328 = vpop.f32.mrb[0].mxu0
    %v2329 = vadd.f32 %v329, %v2328
    %2330 = vmatprep.mubr.bf16.mxu0 %v467
    %2331 = vmatmul.mubr.bf16.gmra.mrb[0].mxu0 %v466
    %v2332 = vpop.f32.mrb[0].mxu0
    %v2333 = vadd.f32 %v325, %v2332
    %v2334 = vpop.f32.mrb[0].mxu0
    %v2335 = vadd.f32 %v329, %v2334
    %v2336 = vpop.f32.mrb[0].mxu0
    %v2337 = vadd.f32 %v325, %v2336
    %v2338 = vpop.f32.mrb[0].mxu0
    %v2339 = vadd.f32 %v329, %v2338
    %2340 = vmatprep.mubr.bf16.mxu0 %v471
    %2341 = vmatmul.mubr.bf16.gmra.mrb[0].mxu0 %v470
    %v2342 = vpop.f32.mrb[0].mxu0
    %v2343 = vadd.f32 %v325, %v2342
    %v2344 = vpop.f32.mrb[0].mxu0
    %v2345 = vadd.f32 %v329, %v2344
    %v2346 = vpop.f32.mrb[0].mxu0
    %v2347 = vadd.f32 %v325, %v2346
    %v2348 = vpop.f32.mrb[0].mxu0
    %v2349 = vadd.f32 %v329, %v2348
    %2350 = vdwg.mxu0
    %2351 = vmatprep.subr.bf16.mxu0 %v1407
    %2352 = vmatpush1.bf16.msra.mxu0 %v1406
    %2353 = vmatprep.subr.bf16.mxu0 %v1415
    %2354 = vmatpush1.bf16.msra.mxu0 %v1414
    %2355 = vmatprep.subr.bf16.mxu0 %v1423
    %2356 = vmatpush1.bf16.msra.mxu0 %v1422
    %2357 = vmatprep.subr.bf16.mxu0 %v1431
    %2358 = vmatpush1.bf16.msra.mxu0 %v1430
    %2359 = vmatprep.subr.bf16.mxu0 %v1439
    %2360 = vmatpush1.bf16.msra.mxu0 %v1438
    %2361 = vmatprep.subr.bf16.mxu0 %v1447
    %2362 = vmatpush1.bf16.msra.mxu0 %v1446
    %2363 = vmatprep.subr.bf16.mxu0 %v1455
    %2364 = vmatpush1.bf16.msra.mxu0 %v1454
    %2365 = vmatprep.subr.bf16.mxu0 %v1463
    %2366 = vmatpush1.bf16.msra.mxu0 %v1462
    %2367 = vmatprep.subr.bf16.mxu0 %v1471
    %2368 = vmatpush1.bf16.msra.mxu0 %v1470
    %2369 = vmatprep.subr.bf16.mxu0 %v1479
    %2370 = vmatpush1.bf16.msra.mxu0 %v1478
    %2371 = vmatprep.subr.bf16.mxu0 %v1487
    %2372 = vmatpush1.bf16.msra.mxu0 %v1486
    %2373 = vmatprep.subr.bf16.mxu0 %v1495
    %2374 = vmatpush1.bf16.msra.mxu0 %v1494
    %2375 = vmatprep.subr.bf16.mxu0 %v1503
    %2376 = vmatpush1.bf16.msra.mxu0 %v1502
    %2377 = vmatprep.subr.bf16.mxu0 %v1511
    %2378 = vmatpush1.bf16.msra.mxu0 %v1510
    %2379 = vmatprep.subr.bf16.mxu0 %v1519
    %2380 = vmatpush1.bf16.msra.mxu0 %v1518
    %2381 = vmatprep.subr.bf16.mxu0 %v1527
    %2382 = vmatpush1.bf16.msra.mxu0 %v1526
    %2383 = vmatprep.mubr.bf16.mxu0 %v445
    %2384 = vmatmul.mubr.bf16.gmra.mrb[0].mxu0 %v444
    %v2385 = vpop.f32.mrb[0].mxu0
    %v2386 = vadd.f32 %v2273, %v2385
    %v2387 = vpop.f32.mrb[0].mxu0
    %v2388 = vadd.f32 %v2275, %v2387
    %v2389 = vpop.f32.mrb[0].mxu0
    %v2390 = vadd.f32 %v2277, %v2389
    %v2391 = vpop.f32.mrb[0].mxu0
    %v2392 = vadd.f32 %v2279, %v2391
    %2393 = vmatprep.mubr.bf16.mxu0 %v449
    %2394 = vmatmul.mubr.bf16.gmra.mrb[0].mxu0 %v448
    %v2395 = vpop.f32.mrb[0].mxu0
    %v2396 = vadd.f32 %v2283, %v2395
    %v2397 = vpop.f32.mrb[0].mxu0
    %v2398 = vadd.f32 %v2285, %v2397
    %v2399 = vpop.f32.mrb[0].mxu0
    %v2400 = vadd.f32 %v2287, %v2399
    %v2401 = vpop.f32.mrb[0].mxu0
    %v2402 = vadd.f32 %v2289, %v2401
    %2403 = vmatprep.mubr.bf16.mxu0 %v453
    %2404 = vmatmul.mubr.bf16.gmra.mrb[0].mxu0 %v452
    %v2405 = vpop.f32.mrb[0].mxu0
    %v2406 = vadd.f32 %v2293, %v2405
    %v2407 = vpop.f32.mrb[0].mxu0
    %v2408 = vadd.f32 %v2295, %v2407
    %v2409 = vpop.f32.mrb[0].mxu0
    %v2410 = vadd.f32 %v2297, %v2409
    %v2411 = vpop.f32.mrb[0].mxu0
    %v2412 = vadd.f32 %v2299, %v2411
    %2413 = vmatprep.mubr.bf16.mxu0 %v457
    %2414 = vmatmul.mubr.bf16.gmra.mrb[0].mxu0 %v456
    %v2415 = vpop.f32.mrb[0].mxu0
    %v2416 = vadd.f32 %v2303, %v2415
    %v2417 = vpop.f32.mrb[0].mxu0
    %v2418 = vadd.f32 %v2305, %v2417
    %v2419 = vpop.f32.mrb[0].mxu0
    %v2420 = vadd.f32 %v2307, %v2419
    %v2421 = vpop.f32.mrb[0].mxu0
    %v2422 = vadd.f32 %v2309, %v2421
    %2423 = vmatprep.mubr.bf16.mxu0 %v461
    %2424 = vmatmul.mubr.bf16.gmra.mrb[0].mxu0 %v460
    %v2425 = vpop.f32.mrb[0].mxu0
    %v2426 = vadd.f32 %v2313, %v2425
    %v2427 = vpop.f32.mrb[0].mxu0
    %v2428 = vadd.f32 %v2315, %v2427
    %v2429 = vpop.f32.mrb[0].mxu0
    %v2430 = vadd.f32 %v2317, %v2429
    %v2431 = vpop.f32.mrb[0].mxu0
    %v2432 = vadd.f32 %v2319, %v2431
    %2433 = vmatprep.mubr.bf16.mxu0 %v465
    %2434 = vmatmul.mubr.bf16.gmra.mrb[0].mxu0 %v464
    %v2435 = vpop.f32.mrb[0].mxu0
    %v2436 = vadd.f32 %v2323, %v2435
    %v2437 = vpop.f32.mrb[0].mxu0
    %v2438 = vadd.f32 %v2325, %v2437
    %v2439 = vpop.f32.mrb[0].mxu0
    %v2440 = vadd.f32 %v2327, %v2439
    %v2441 = vpop.f32.mrb[0].mxu0
    %v2442 = vadd.f32 %v2329, %v2441
    %2443 = vmatprep.mubr.bf16.mxu0 %v469
    %2444 = vmatmul.mubr.bf16.gmra.mrb[0].mxu0 %v468
    %v2445 = vpop.f32.mrb[0].mxu0
    %v2446 = vadd.f32 %v2333, %v2445
    %v2447 = vpop.f32.mrb[0].mxu0
    %v2448 = vadd.f32 %v2335, %v2447
    %v2449 = vpop.f32.mrb[0].mxu0
    %v2450 = vadd.f32 %v2337, %v2449
    %v2451 = vpop.f32.mrb[0].mxu0
    %v2452 = vadd.f32 %v2339, %v2451
    %2453 = vmatprep.mubr.bf16.mxu0 %v473
    %2454 = vmatmul.mubr.bf16.gmra.mrb[0].mxu0 %v472
    %v2455 = vpop.f32.mrb[0].mxu0
    %v2456 = vadd.f32 %v2343, %v2455
    %v2457 = vpop.f32.mrb[0].mxu0
    %v2458 = vadd.f32 %v2345, %v2457
    %v2459 = vpop.f32.mrb[0].mxu0
    %v2460 = vadd.f32 %v2347, %v2459
    %v2461 = vpop.f32.mrb[0].mxu0
    %v2462 = vadd.f32 %v2349, %v2461
    %2463 = vdwg.mxu0
    %2464 = vmatprep.subr.bf16.mxu0 %v1281
    %2465 = vmatpush1.bf16.msra.mxu0 %v1280
    %2466 = vmatprep.subr.bf16.mxu0 %v1289
    %2467 = vmatpush1.bf16.msra.mxu0 %v1288
    %2468 = vmatprep.subr.bf16.mxu0 %v1297
    %2469 = vmatpush1.bf16.msra.mxu0 %v1296
    %2470 = vmatprep.subr.bf16.mxu0 %v1305
    %2471 = vmatpush1.bf16.msra.mxu0 %v1304
    %2472 = vmatprep.subr.bf16.mxu0 %v1313
    %2473 = vmatpush1.bf16.msra.mxu0 %v1312
    %2474 = vmatprep.subr.bf16.mxu0 %v1321
    %2475 = vmatpush1.bf16.msra.mxu0 %v1320
    %2476 = vmatprep.subr.bf16.mxu0 %v1329
    %2477 = vmatpush1.bf16.msra.mxu0 %v1328
    %2478 = vmatprep.subr.bf16.mxu0 %v1337
    %2479 = vmatpush1.bf16.msra.mxu0 %v1336
    %2480 = vmatprep.subr.bf16.mxu0 %v1345
    %2481 = vmatpush1.bf16.msra.mxu0 %v1344
    %2482 = vmatprep.subr.bf16.mxu0 %v1353
    %2483 = vmatpush1.bf16.msra.mxu0 %v1352
    %2484 = vmatprep.subr.bf16.mxu0 %v1361
    %2485 = vmatpush1.bf16.msra.mxu0 %v1360
    %2486 = vmatprep.subr.bf16.mxu0 %v1369
    %2487 = vmatpush1.bf16.msra.mxu0 %v1368
    %2488 = vmatprep.subr.bf16.mxu0 %v1377
    %2489 = vmatpush1.bf16.msra.mxu0 %v1376
    %2490 = vmatprep.subr.bf16.mxu0 %v1385
    %2491 = vmatpush1.bf16.msra.mxu0 %v1384
    %2492 = vmatprep.subr.bf16.mxu0 %v1393
    %2493 = vmatpush1.bf16.msra.mxu0 %v1392
    %2494 = vmatprep.subr.bf16.mxu0 %v1401
    %2495 = vmatpush1.bf16.msra.mxu0 %v1400
    %2496 = vmatprep.mubr.bf16.mxu0 %v443
    %2497 = vmatmul.mubr.bf16.gmra.mrb[0].mxu0 %v442
    %v2498 = vpop.f32.mrb[0].mxu0
    %v2499 = vadd.f32 %v333, %v2498
    %v2500 = vpop.f32.mrb[0].mxu0
    %v2501 = vadd.f32 %v337, %v2500
    %v2502 = vpop.f32.mrb[0].mxu0
    %v2503 = vadd.f32 %v333, %v2502
    %v2504 = vpop.f32.mrb[0].mxu0
    %v2505 = vadd.f32 %v337, %v2504
    %2506 = vmatprep.mubr.bf16.mxu0 %v447
    %2507 = vmatmul.mubr.bf16.gmra.mrb[0].mxu0 %v446
    %v2508 = vpop.f32.mrb[0].mxu0
    %v2509 = vadd.f32 %v333, %v2508
    %v2510 = vpop.f32.mrb[0].mxu0
    %v2511 = vadd.f32 %v337, %v2510
    %v2512 = vpop.f32.mrb[0].mxu0
    %v2513 = vadd.f32 %v333, %v2512
    %v2514 = vpop.f32.mrb[0].mxu0
    %v2515 = vadd.f32 %v337, %v2514
    %2516 = vmatprep.mubr.bf16.mxu0 %v451
    %2517 = vmatmul.mubr.bf16.gmra.mrb[0].mxu0 %v450
    %v2518 = vpop.f32.mrb[0].mxu0
    %v2519 = vadd.f32 %v333, %v2518
    %v2520 = vpop.f32.mrb[0].mxu0
    %v2521 = vadd.f32 %v337, %v2520
    %v2522 = vpop.f32.mrb[0].mxu0
    %v2523 = vadd.f32 %v333, %v2522
    %v2524 = vpop.f32.mrb[0].mxu0
    %v2525 = vadd.f32 %v337, %v2524
    %2526 = vmatprep.mubr.bf16.mxu0 %v455
    %2527 = vmatmul.mubr.bf16.gmra.mrb[0].mxu0 %v454
    %v2528 = vpop.f32.mrb[0].mxu0
    %v2529 = vadd.f32 %v333, %v2528
    %v2530 = vpop.f32.mrb[0].mxu0
    %v2531 = vadd.f32 %v337, %v2530
    %v2532 = vpop.f32.mrb[0].mxu0
    %v2533 = vadd.f32 %v333, %v2532
    %v2534 = vpop.f32.mrb[0].mxu0
    %v2535 = vadd.f32 %v337, %v2534
    %2536 = vmatprep.mubr.bf16.mxu0 %v459
    %2537 = vmatmul.mubr.bf16.gmra.mrb[0].mxu0 %v458
    %v2538 = vpop.f32.mrb[0].mxu0
    %v2539 = vadd.f32 %v333, %v2538
    %v2540 = vpop.f32.mrb[0].mxu0
    %v2541 = vadd.f32 %v337, %v2540
    %v2542 = vpop.f32.mrb[0].mxu0
    %v2543 = vadd.f32 %v333, %v2542
    %v2544 = vpop.f32.mrb[0].mxu0
    %v2545 = vadd.f32 %v337, %v2544
    %2546 = vmatprep.mubr.bf16.mxu0 %v463
    %2547 = vmatmul.mubr.bf16.gmra.mrb[0].mxu0 %v462
    %v2548 = vpop.f32.mrb[0].mxu0
    %v2549 = vadd.f32 %v333, %v2548
    %v2550 = vpop.f32.mrb[0].mxu0
    %v2551 = vadd.f32 %v337, %v2550
    %v2552 = vpop.f32.mrb[0].mxu0
    %v2553 = vadd.f32 %v333, %v2552
    %v2554 = vpop.f32.mrb[0].mxu0
    %v2555 = vadd.f32 %v337, %v2554
    %2556 = vmatprep.mubr.bf16.mxu0 %v467
    %2557 = vmatmul.mubr.bf16.gmra.mrb[0].mxu0 %v466
    %v2558 = vpop.f32.mrb[0].mxu0
    %v2559 = vadd.f32 %v333, %v2558
    %v2560 = vpop.f32.mrb[0].mxu0
    %v2561 = vadd.f32 %v337, %v2560
    %v2562 = vpop.f32.mrb[0].mxu0
    %v2563 = vadd.f32 %v333, %v2562
    %v2564 = vpop.f32.mrb[0].mxu0
    %v2565 = vadd.f32 %v337, %v2564
    %2566 = vmatprep.mubr.bf16.mxu0 %v471
    %2567 = vmatmul.mubr.bf16.gmra.mrb[0].mxu0 %v470
    %v2568 = vpop.f32.mrb[0].mxu0
    %v2569 = vadd.f32 %v333, %v2568
    %v2570 = vpop.f32.mrb[0].mxu0
    %v2571 = vadd.f32 %v337, %v2570
    %v2572 = vpop.f32.mrb[0].mxu0
    %v2573 = vadd.f32 %v333, %v2572
    %v2574 = vpop.f32.mrb[0].mxu0
    %v2575 = vadd.f32 %v337, %v2574
    %2576 = vdwg.mxu0
    %2577 = vmatprep.subr.bf16.mxu0 %v1409
    %2578 = vmatpush1.bf16.msra.mxu0 %v1408
    %2579 = vmatprep.subr.bf16.mxu0 %v1417
    %2580 = vmatpush1.bf16.msra.mxu0 %v1416
    %2581 = vmatprep.subr.bf16.mxu0 %v1425
    %2582 = vmatpush1.bf16.msra.mxu0 %v1424
    %2583 = vmatprep.subr.bf16.mxu0 %v1433
    %2584 = vmatpush1.bf16.msra.mxu0 %v1432
    %2585 = vmatprep.subr.bf16.mxu0 %v1441
    %2586 = vmatpush1.bf16.msra.mxu0 %v1440
    %2587 = vmatprep.subr.bf16.mxu0 %v1449
    %2588 = vmatpush1.bf16.msra.mxu0 %v1448
    %2589 = vmatprep.subr.bf16.mxu0 %v1457
    %2590 = vmatpush1.bf16.msra.mxu0 %v1456
    %2591 = vmatprep.subr.bf16.mxu0 %v1465
    %2592 = vmatpush1.bf16.msra.mxu0 %v1464
    %2593 = vmatprep.subr.bf16.mxu0 %v1473
    %2594 = vmatpush1.bf16.msra.mxu0 %v1472
    %2595 = vmatprep.subr.bf16.mxu0 %v1481
    %2596 = vmatpush1.bf16.msra.mxu0 %v1480
    %2597 = vmatprep.subr.bf16.mxu0 %v1489
    %2598 = vmatpush1.bf16.msra.mxu0 %v1488
    %2599 = vmatprep.subr.bf16.mxu0 %v1497
    %2600 = vmatpush1.bf16.msra.mxu0 %v1496
    %2601 = vmatprep.subr.bf16.mxu0 %v1505
    %2602 = vmatpush1.bf16.msra.mxu0 %v1504
    %2603 = vmatprep.subr.bf16.mxu0 %v1513
    %2604 = vmatpush1.bf16.msra.mxu0 %v1512
    %2605 = vmatprep.subr.bf16.mxu0 %v1521
    %2606 = vmatpush1.bf16.msra.mxu0 %v1520
    %2607 = vmatprep.subr.bf16.mxu0 %v1529
    %2608 = vmatpush1.bf16.msra.mxu0 %v1528
    %2609 = vmatprep.mubr.bf16.mxu0 %v445
    %2610 = vmatmul.mubr.bf16.gmra.mrb[0].mxu0 %v444
    %v2611 = vpop.f32.mrb[0].mxu0
    %v2612 = vadd.f32 %v2499, %v2611
    %v2613 = vpop.f32.mrb[0].mxu0
    %v2614 = vadd.f32 %v2501, %v2613
    %v2615 = vpop.f32.mrb[0].mxu0
    %v2616 = vadd.f32 %v2503, %v2615
    %v2617 = vpop.f32.mrb[0].mxu0
    %v2618 = vadd.f32 %v2505, %v2617
    %2619 = vmatprep.mubr.bf16.mxu0 %v449
    %2620 = vmatmul.mubr.bf16.gmra.mrb[0].mxu0 %v448
    %v2621 = vpop.f32.mrb[0].mxu0
    %v2622 = vadd.f32 %v2509, %v2621
    %v2623 = vpop.f32.mrb[0].mxu0
    %v2624 = vadd.f32 %v2511, %v2623
    %v2625 = vpop.f32.mrb[0].mxu0
    %v2626 = vadd.f32 %v2513, %v2625
    %v2627 = vpop.f32.mrb[0].mxu0
    %v2628 = vadd.f32 %v2515, %v2627
    %2629 = vmatprep.mubr.bf16.mxu0 %v453
    %2630 = vmatmul.mubr.bf16.gmra.mrb[0].mxu0 %v452
    %v2631 = vpop.f32.mrb[0].mxu0
    %v2632 = vadd.f32 %v2519, %v2631
    %v2633 = vpop.f32.mrb[0].mxu0
    %v2634 = vadd.f32 %v2521, %v2633
    %v2635 = vpop.f32.mrb[0].mxu0
    %v2636 = vadd.f32 %v2523, %v2635
    %v2637 = vpop.f32.mrb[0].mxu0
    %v2638 = vadd.f32 %v2525, %v2637
    %2639 = vmatprep.mubr.bf16.mxu0 %v457
    %2640 = vmatmul.mubr.bf16.gmra.mrb[0].mxu0 %v456
    %v2641 = vpop.f32.mrb[0].mxu0
    %v2642 = vadd.f32 %v2529, %v2641
    %v2643 = vpop.f32.mrb[0].mxu0
    %v2644 = vadd.f32 %v2531, %v2643
    %v2645 = vpop.f32.mrb[0].mxu0
    %v2646 = vadd.f32 %v2533, %v2645
    %v2647 = vpop.f32.mrb[0].mxu0
    %v2648 = vadd.f32 %v2535, %v2647
    %2649 = vmatprep.mubr.bf16.mxu0 %v461
    %2650 = vmatmul.mubr.bf16.gmra.mrb[0].mxu0 %v460
    %v2651 = vpop.f32.mrb[0].mxu0
    %v2652 = vadd.f32 %v2539, %v2651
    %v2653 = vpop.f32.mrb[0].mxu0
    %v2654 = vadd.f32 %v2541, %v2653
    %v2655 = vpop.f32.mrb[0].mxu0
    %v2656 = vadd.f32 %v2543, %v2655
    %v2657 = vpop.f32.mrb[0].mxu0
    %v2658 = vadd.f32 %v2545, %v2657
    %2659 = vmatprep.mubr.bf16.mxu0 %v465
    %2660 = vmatmul.mubr.bf16.gmra.mrb[0].mxu0 %v464
    %v2661 = vpop.f32.mrb[0].mxu0
    %v2662 = vadd.f32 %v2549, %v2661
    %v2663 = vpop.f32.mrb[0].mxu0
    %v2664 = vadd.f32 %v2551, %v2663
    %v2665 = vpop.f32.mrb[0].mxu0
    %v2666 = vadd.f32 %v2553, %v2665
    %v2667 = vpop.f32.mrb[0].mxu0
    %v2668 = vadd.f32 %v2555, %v2667
    %2669 = vmatprep.mubr.bf16.mxu0 %v469
    %2670 = vmatmul.mubr.bf16.gmra.mrb[0].mxu0 %v468
    %v2671 = vpop.f32.mrb[0].mxu0
    %v2672 = vadd.f32 %v2559, %v2671
    %v2673 = vpop.f32.mrb[0].mxu0
    %v2674 = vadd.f32 %v2561, %v2673
    %v2675 = vpop.f32.mrb[0].mxu0
    %v2676 = vadd.f32 %v2563, %v2675
    %v2677 = vpop.f32.mrb[0].mxu0
    %v2678 = vadd.f32 %v2565, %v2677
    %2679 = vmatprep.mubr.bf16.mxu0 %v473
    %2680 = vmatmul.mubr.bf16.gmra.mrb[0].mxu0 %v472
    %v2681 = vpop.f32.mrb[0].mxu0
    %v2682 = vadd.f32 %v2569, %v2681
    %v2683 = vpop.f32.mrb[0].mxu0
    %v2684 = vadd.f32 %v2571, %v2683
    %v2685 = vpop.f32.mrb[0].mxu0
    %v2686 = vadd.f32 %v2573, %v2685
    %v2687 = vpop.f32.mrb[0].mxu0
    %v2688 = vadd.f32 %v2575, %v2687
    %2689 = vdwg.mxu0
    %v2690 = vpack.c.bf16 %v1938, %v1934
    %v2691 = vpack.c.bf16 %v1940, %v1936
    %v2692 = vpack.c.bf16 %v1948, %v1944
    %v2693 = vpack.c.bf16 %v1950, %v1946
    %v2694 = vpack.c.bf16 %v1958, %v1954
    %v2695 = vpack.c.bf16 %v1960, %v1956
    %v2696 = vpack.c.bf16 %v1968, %v1964
    %v2697 = vpack.c.bf16 %v1970, %v1966
    %v2698 = vpack.c.bf16 %v1978, %v1974
    %v2699 = vpack.c.bf16 %v1980, %v1976
    %v2700 = vpack.c.bf16 %v1988, %v1984
    %v2701 = vpack.c.bf16 %v1990, %v1986
    %v2702 = vpack.c.bf16 %v1998, %v1994
    %v2703 = vpack.c.bf16 %v2000, %v1996
    %v2704 = vpack.c.bf16 %v2008, %v2004
    %v2705 = vpack.c.bf16 %v2010, %v2006
    %v2706 = vpack.c.bf16 %v2164, %v2160
    %v2707 = vpack.c.bf16 %v2166, %v2162
    %v2708 = vpack.c.bf16 %v2174, %v2170
    %v2709 = vpack.c.bf16 %v2176, %v2172
    %v2710 = vpack.c.bf16 %v2184, %v2180
    %v2711 = vpack.c.bf16 %v2186, %v2182
    %v2712 = vpack.c.bf16 %v2194, %v2190
    %v2713 = vpack.c.bf16 %v2196, %v2192
    %v2714 = vpack.c.bf16 %v2204, %v2200
    %v2715 = vpack.c.bf16 %v2206, %v2202
    %v2716 = vpack.c.bf16 %v2214, %v2210
    %v2717 = vpack.c.bf16 %v2216, %v2212
    %v2718 = vpack.c.bf16 %v2224, %v2220
    %v2719 = vpack.c.bf16 %v2226, %v2222
    %v2720 = vpack.c.bf16 %v2234, %v2230
    %v2721 = vpack.c.bf16 %v2236, %v2232
    %v2722 = vpack.c.bf16 %v2390, %v2386
    %v2723 = vpack.c.bf16 %v2392, %v2388
    %v2724 = vpack.c.bf16 %v2616, %v2612
    %v2725 = vpack.c.bf16 %v2618, %v2614
    %v2726 = vpack.c.bf16 %v2400, %v2396
    %v2727 = vpack.c.bf16 %v2402, %v2398
    %v2728 = vpack.c.bf16 %v2626, %v2622
    %v2729 = vpack.c.bf16 %v2628, %v2624
    %v2730 = vpack.c.bf16 %v2410, %v2406
    %v2731 = vpack.c.bf16 %v2412, %v2408
    %v2732 = vpack.c.bf16 %v2636, %v2632
    %v2733 = vpack.c.bf16 %v2638, %v2634
    %v2734 = vpack.c.bf16 %v2420, %v2416
    %v2735 = vpack.c.bf16 %v2422, %v2418
    %v2736 = vpack.c.bf16 %v2646, %v2642
    %v2737 = vpack.c.bf16 %v2648, %v2644
    %v2738 = vpack.c.bf16 %v2430, %v2426
    %v2739 = vpack.c.bf16 %v2432, %v2428
    %v2740 = vpack.c.bf16 %v2656, %v2652
    %v2741 = vpack.c.bf16 %v2658, %v2654
    %v2742 = vpack.c.bf16 %v2440, %v2436
    %v2743 = vpack.c.bf16 %v2442, %v2438
    %v2744 = vpack.c.bf16 %v2666, %v2662
    %v2745 = vpack.c.bf16 %v2668, %v2664
    %v2746 = vpack.c.bf16 %v2450, %v2446
    %v2747 = vpack.c.bf16 %v2452, %v2448
    %v2748 = vpack.c.bf16 %v2676, %v2672
    %v2749 = vpack.c.bf16 %v2678, %v2674
    %v2750 = vpack.c.bf16 %v2460, %v2456
    %v2751 = vpack.c.bf16 %v2462, %v2458
    %v2752 = vpack.c.bf16 %v2686, %v2682
    %v2753 = vpack.c.bf16 %v2688, %v2684
    %2754 = vmatprep.subr.bf16.mxu0 %v2707
    %2755 = vmatpush1.bf16.xpose.msra.mxu0 %v2706
    %2756 = vmatprep.subr.bf16.mxu0 %v2709
    %2757 = vmatpush1.bf16.xpose.msra.mxu0 %v2708
    %2758 = vmatprep.subr.bf16.mxu0 %v2711
    %2759 = vmatpush1.bf16.xpose.msra.mxu0 %v2710
    %2760 = vmatprep.subr.bf16.mxu0 %v2713
    %2761 = vmatpush1.bf16.xpose.msra.mxu0 %v2712
    %2762 = vmatprep.subr.bf16.mxu0 0
    %2763 = vmatpush1.bf16.xpose.msra.mxu0 0
    %2764 = vmatprep.subr.bf16.mxu0 0
    %2765 = vmatpush1.bf16.xpose.msra.mxu0 0
    %2766 = vmatprep.subr.bf16.mxu0 0
    %2767 = vmatpush1.bf16.xpose.msra.mxu0 0
    %2768 = vmatprep.subr.bf16.mxu0 0
    %2769 = vmatpush1.bf16.xpose.msra.mxu0 0
    %2770 = vmatprep.subr.bf16.mxu0 0
    %2771 = vmatpush1.bf16.xpose.msra.mxu0 0
    %2772 = vmatprep.subr.bf16.mxu0 0
    %2773 = vmatpush1.bf16.xpose.msra.mxu0 0
    %2774 = vmatprep.subr.bf16.mxu0 0
    %2775 = vmatpush1.bf16.xpose.msra.mxu0 0
    %2776 = vmatprep.subr.bf16.mxu0 0
    %2777 = vmatpush1.bf16.xpose.msra.mxu0 0
    %2778 = vmatprep.subr.bf16.mxu0 0
    %2779 = vmatpush1.bf16.xpose.msra.mxu0 0
    %2780 = vmatprep.subr.bf16.mxu0 0
    %2781 = vmatpush1.bf16.xpose.msra.mxu0 0
    %2782 = vmatprep.subr.bf16.mxu0 0
    %2783 = vmatpush1.bf16.xpose.msra.mxu0 0
    %2784 = vmatprep.subr.bf16.mxu0 0
    %2785 = vmatpush1.bf16.xpose.msra.mxu0 0
    %2786 = vmatprep.mubr.bf16.mxu0 %v2691
    %2787 = vmatmul.mubr.bf16.gmra.mrb[0].mxu0 %v2690
    %v2788 = vpop.f32.mrb[0].mxu0
    %v2789 = vadd.f32 0.0, %v2788
    %v2790 = vpop.f32.mrb[0].mxu0
    %v2791 = vpop.f32.mrb[0].mxu0
    %v2792 = vadd.f32 0.0, %v2791
    %v2793 = vpop.f32.mrb[0].mxu0
    %2794 = vmatprep.mubr.bf16.mxu0 %v2693
    %2795 = vmatmul.mubr.bf16.gmra.mrb[0].mxu0 %v2692
    %v2796 = vpop.f32.mrb[0].mxu0
    %v2797 = vadd.f32 0.0, %v2796
    %v2798 = vpop.f32.mrb[0].mxu0
    %v2799 = vpop.f32.mrb[0].mxu0
    %v2800 = vadd.f32 0.0, %v2799
    %v2801 = vpop.f32.mrb[0].mxu0
    %2802 = vmatprep.mubr.bf16.mxu0 %v2695
    %2803 = vmatmul.mubr.bf16.gmra.mrb[0].mxu0 %v2694
    %v2804 = vpop.f32.mrb[0].mxu0
    %v2805 = vadd.f32 0.0, %v2804
    %v2806 = vpop.f32.mrb[0].mxu0
    %v2807 = vpop.f32.mrb[0].mxu0
    %v2808 = vadd.f32 0.0, %v2807
    %v2809 = vpop.f32.mrb[0].mxu0
    %2810 = vmatprep.mubr.bf16.mxu0 %v2697
    %2811 = vmatmul.mubr.bf16.gmra.mrb[0].mxu0 %v2696
    %v2812 = vpop.f32.mrb[0].mxu0
    %v2813 = vadd.f32 0.0, %v2812
    %v2814 = vpop.f32.mrb[0].mxu0
    %v2815 = vpop.f32.mrb[0].mxu0
    %v2816 = vadd.f32 0.0, %v2815
    %v2817 = vpop.f32.mrb[0].mxu0
    %2818 = vdwg.mxu0
    %2819 = vmatprep.subr.bf16.mxu0 %v2715
    %2820 = vmatpush1.bf16.xpose.msra.mxu0 %v2714
    %2821 = vmatprep.subr.bf16.mxu0 %v2717
    %2822 = vmatpush1.bf16.xpose.msra.mxu0 %v2716
    %2823 = vmatprep.subr.bf16.mxu0 %v2719
    %2824 = vmatpush1.bf16.xpose.msra.mxu0 %v2718
    %2825 = vmatprep.subr.bf16.mxu0 %v2721
    %2826 = vmatpush1.bf16.xpose.msra.mxu0 %v2720
    %2827 = vmatprep.subr.bf16.mxu0 0
    %2828 = vmatpush1.bf16.xpose.msra.mxu0 0
    %2829 = vmatprep.subr.bf16.mxu0 0
    %2830 = vmatpush1.bf16.xpose.msra.mxu0 0
    %2831 = vmatprep.subr.bf16.mxu0 0
    %2832 = vmatpush1.bf16.xpose.msra.mxu0 0
    %2833 = vmatprep.subr.bf16.mxu0 0
    %2834 = vmatpush1.bf16.xpose.msra.mxu0 0
    %2835 = vmatprep.subr.bf16.mxu0 0
    %2836 = vmatpush1.bf16.xpose.msra.mxu0 0
    %2837 = vmatprep.subr.bf16.mxu0 0
    %2838 = vmatpush1.bf16.xpose.msra.mxu0 0
    %2839 = vmatprep.subr.bf16.mxu0 0
    %2840 = vmatpush1.bf16.xpose.msra.mxu0 0
    %2841 = vmatprep.subr.bf16.mxu0 0
    %2842 = vmatpush1.bf16.xpose.msra.mxu0 0
    %2843 = vmatprep.subr.bf16.mxu0 0
    %2844 = vmatpush1.bf16.xpose.msra.mxu0 0
    %2845 = vmatprep.subr.bf16.mxu0 0
    %2846 = vmatpush1.bf16.xpose.msra.mxu0 0
    %2847 = vmatprep.subr.bf16.mxu0 0
    %2848 = vmatpush1.bf16.xpose.msra.mxu0 0
    %2849 = vmatprep.subr.bf16.mxu0 0
    %2850 = vmatpush1.bf16.xpose.msra.mxu0 0
    %2851 = vmatprep.mubr.bf16.mxu0 %v2699
    %2852 = vmatmul.mubr.bf16.gmra.mrb[0].mxu0 %v2698
    %v2853 = vpop.f32.mrb[0].mxu0
    %v2854 = vadd.f32 0.0, %v2853
    %v2855 = vpop.f32.mrb[0].mxu0
    %v2856 = vpop.f32.mrb[0].mxu0
    %v2857 = vadd.f32 0.0, %v2856
    %v2858 = vpop.f32.mrb[0].mxu0
    %2859 = vmatprep.mubr.bf16.mxu0 %v2701
    %2860 = vmatmul.mubr.bf16.gmra.mrb[0].mxu0 %v2700
    %v2861 = vpop.f32.mrb[0].mxu0
    %v2862 = vadd.f32 0.0, %v2861
    %v2863 = vpop.f32.mrb[0].mxu0
    %v2864 = vpop.f32.mrb[0].mxu0
    %v2865 = vadd.f32 0.0, %v2864
    %v2866 = vpop.f32.mrb[0].mxu0
    %2867 = vmatprep.mubr.bf16.mxu0 %v2703
    %2868 = vmatmul.mubr.bf16.gmra.mrb[0].mxu0 %v2702
    %v2869 = vpop.f32.mrb[0].mxu0
    %v2870 = vadd.f32 0.0, %v2869
    %v2871 = vpop.f32.mrb[0].mxu0
    %v2872 = vpop.f32.mrb[0].mxu0
    %v2873 = vadd.f32 0.0, %v2872
    %v2874 = vpop.f32.mrb[0].mxu0
    %2875 = vmatprep.mubr.bf16.mxu0 %v2705
    %2876 = vmatmul.mubr.bf16.gmra.mrb[0].mxu0 %v2704
    %v2877 = vpop.f32.mrb[0].mxu0
    %v2878 = vadd.f32 0.0, %v2877
    %v2879 = vpop.f32.mrb[0].mxu0
    %v2880 = vpop.f32.mrb[0].mxu0
    %v2881 = vadd.f32 0.0, %v2880
    %v2882 = vpop.f32.mrb[0].mxu0
    %2883 = vdwg.mxu0
    %vm2884 = vcmask 523264
    %v2885 = vsel %vm2884, %v2789, -inf
    %2886 = vmax.xlane.f32.xlu0 %v2885
    %v2887 = vpop.xlane.xlu0 %2886
    %v2888 = vsel %vm2884, %v2792, -inf
    %2889 = vmax.xlane.f32.xlu0 %v2888
    %v2890 = vpop.xlane.xlu0 %2889
    %v2891 = vsel %vm2884, %v2797, -inf
    %2892 = vmax.xlane.f32.xlu0 %v2891
    %v2893 = vpop.xlane.xlu0 %2892
    %v2894 = vsel %vm2884, %v2800, -inf
    %2895 = vmax.xlane.f32.xlu0 %v2894
    %v2896 = vpop.xlane.xlu0 %2895
    %v2897 = vsel %vm2884, %v2805, -inf
    %2898 = vmax.xlane.f32.xlu0 %v2897
    %v2899 = vpop.xlane.xlu0 %2898
    %v2900 = vsel %vm2884, %v2808, -inf
    %2901 = vmax.xlane.f32.xlu0 %v2900
    %v2902 = vpop.xlane.xlu0 %2901
    %v2903 = vsel %vm2884, %v2813, -inf
    %2904 = vmax.xlane.f32.xlu0 %v2903
    %v2905 = vpop.xlane.xlu0 %2904
    %v2906 = vsel %vm2884, %v2816, -inf
    %2907 = vmax.xlane.f32.xlu0 %v2906
    %v2908 = vpop.xlane.xlu0 %2907
    %v2909 = vsel %vm2884, %v2854, -inf
    %2910 = vmax.xlane.f32.xlu0 %v2909
    %v2911 = vpop.xlane.xlu0 %2910
    %v2912 = vsel %vm2884, %v2857, -inf
    %2913 = vmax.xlane.f32.xlu0 %v2912
    %v2914 = vpop.xlane.xlu0 %2913
    %v2915 = vsel %vm2884, %v2862, -inf
    %2916 = vmax.xlane.f32.xlu0 %v2915
    %v2917 = vpop.xlane.xlu0 %2916
    %v2918 = vsel %vm2884, %v2865, -inf
    %2919 = vmax.xlane.f32.xlu0 %v2918
    %v2920 = vpop.xlane.xlu0 %2919
    %v2921 = vsel %vm2884, %v2870, -inf
    %2922 = vmax.xlane.f32.xlu0 %v2921
    %v2923 = vpop.xlane.xlu0 %2922
    %v2924 = vsel %vm2884, %v2873, -inf
    %2925 = vmax.xlane.f32.xlu0 %v2924
    %v2926 = vpop.xlane.xlu0 %2925
    %v2927 = vsel %vm2884, %v2878, -inf
    %2928 = vmax.xlane.f32.xlu0 %v2927
    %v2929 = vpop.xlane.xlu0 %2928
    %v2930 = vsel %vm2884, %v2881, -inf
    %2931 = vmax.xlane.f32.xlu0 %v2930
    %v2932 = vpop.xlane.xlu0 %2931
    %v2933 = vsub.f32 %v2789, %v2887
    %v2934 = vsub.f32 %v2792, %v2890
    %v2935 = vsub.f32 %v2797, %v2893
    %v2936 = vsub.f32 %v2800, %v2896
    %v2937 = vsub.f32 %v2805, %v2899
    %v2938 = vsub.f32 %v2808, %v2902
    %v2939 = vsub.f32 %v2813, %v2905
    %v2940 = vsub.f32 %v2816, %v2908
    %v2941 = vsub.f32 %v2854, %v2911
    %v2942 = vsub.f32 %v2857, %v2914
    %v2943 = vsub.f32 %v2862, %v2917
    %v2944 = vsub.f32 %v2865, %v2920
    %v2945 = vsub.f32 %v2870, %v2923
    %v2946 = vsub.f32 %v2873, %v2926
    %v2947 = vsub.f32 %v2878, %v2929
    %v2948 = vsub.f32 %v2881, %v2932
    %v2949 = vmul.f32 %v2933, 1.442695
    %v2950 = vpow.pop %v2949
    %v2951 = vmul.f32 %v2934, 1.442695
    %v2952 = vpow.pop %v2951
    %v2953 = vmul.f32 %v2935, 1.442695
    %v2954 = vpow.pop %v2953
    %v2955 = vmul.f32 %v2936, 1.442695
    %v2956 = vpow.pop %v2955
    %v2957 = vmul.f32 %v2937, 1.442695
    %v2958 = vpow.pop %v2957
    %v2959 = vmul.f32 %v2938, 1.442695
    %v2960 = vpow.pop %v2959
    %v2961 = vmul.f32 %v2939, 1.442695
    %v2962 = vpow.pop %v2961
    %v2963 = vmul.f32 %v2940, 1.442695
    %v2964 = vpow.pop %v2963
    %v2965 = vmul.f32 %v2941, 1.442695
    %v2966 = vpow.pop %v2965
    %v2967 = vmul.f32 %v2942, 1.442695
    %v2968 = vpow.pop %v2967
    %v2969 = vmul.f32 %v2943, 1.442695
    %v2970 = vpow.pop %v2969
    %v2971 = vmul.f32 %v2944, 1.442695
    %v2972 = vpow.pop %v2971
    %v2973 = vmul.f32 %v2945, 1.442695
    %v2974 = vpow.pop %v2973
    %v2975 = vmul.f32 %v2946, 1.442695
    %v2976 = vpow.pop %v2975
    %v2977 = vmul.f32 %v2947, 1.442695
    %v2978 = vpow.pop %v2977
    %v2979 = vmul.f32 %v2948, 1.442695
    %v2980 = vpow.pop %v2979
    %v2981 = vsel %vm2884, %v2950, 0.0
    %2982 = vadd.xlane.f32.xlu0 %v2981
    %v2983 = vpop.xlane.xlu0 %2982
    %v2984 = vsel %vm2884, %v2952, 0.0
    %2985 = vadd.xlane.f32.xlu0 %v2984
    %v2986 = vpop.xlane.xlu0 %2985
    %v2987 = vsel %vm2884, %v2954, 0.0
    %2988 = vadd.xlane.f32.xlu0 %v2987
    %v2989 = vpop.xlane.xlu0 %2988
    %v2990 = vsel %vm2884, %v2956, 0.0
    %2991 = vadd.xlane.f32.xlu0 %v2990
    %v2992 = vpop.xlane.xlu0 %2991
    %v2993 = vsel %vm2884, %v2958, 0.0
    %2994 = vadd.xlane.f32.xlu0 %v2993
    %v2995 = vpop.xlane.xlu0 %2994
    %v2996 = vsel %vm2884, %v2960, 0.0
    %2997 = vadd.xlane.f32.xlu0 %v2996
    %v2998 = vpop.xlane.xlu0 %2997
    %v2999 = vsel %vm2884, %v2962, 0.0
    %3000 = vadd.xlane.f32.xlu0 %v2999
    %v3001 = vpop.xlane.xlu0 %3000
    %v3002 = vsel %vm2884, %v2964, 0.0
    %3003 = vadd.xlane.f32.xlu0 %v3002
    %v3004 = vpop.xlane.xlu0 %3003
    %v3005 = vsel %vm2884, %v2966, 0.0
    %3006 = vadd.xlane.f32.xlu0 %v3005
    %v3007 = vpop.xlane.xlu0 %3006
    %v3008 = vsel %vm2884, %v2968, 0.0
    %3009 = vadd.xlane.f32.xlu0 %v3008
    %v3010 = vpop.xlane.xlu0 %3009
    %v3011 = vsel %vm2884, %v2970, 0.0
    %3012 = vadd.xlane.f32.xlu0 %v3011
    %v3013 = vpop.xlane.xlu0 %3012
    %v3014 = vsel %vm2884, %v2972, 0.0
    %3015 = vadd.xlane.f32.xlu0 %v3014
    %v3016 = vpop.xlane.xlu0 %3015
    %v3017 = vsel %vm2884, %v2974, 0.0
    %3018 = vadd.xlane.f32.xlu0 %v3017
    %v3019 = vpop.xlane.xlu0 %3018
    %v3020 = vsel %vm2884, %v2976, 0.0
    %3021 = vadd.xlane.f32.xlu0 %v3020
    %v3022 = vpop.xlane.xlu0 %3021
    %v3023 = vsel %vm2884, %v2978, 0.0
    %3024 = vadd.xlane.f32.xlu0 %v3023
    %v3025 = vpop.xlane.xlu0 %3024
    %v3026 = vsel %vm2884, %v2980, 0.0
    %3027 = vadd.xlane.f32.xlu0 %v3026
    %v3028 = vpop.xlane.xlu0 %3027
    %v3029 = vpack.c.bf16 %v2952, %v2950
    %v3030 = vpack.c.bf16 %v2956, %v2954
    %v3031 = vpack.c.bf16 %v2960, %v2958
    %v3032 = vpack.c.bf16 %v2964, %v2962
    %v3033 = vpack.c.bf16 %v2968, %v2966
    %v3034 = vpack.c.bf16 %v2972, %v2970
    %v3035 = vpack.c.bf16 %v2976, %v2974
    %v3036 = vpack.c.bf16 %v2980, %v2978
    %v3038 = vsel %vm2884, %v3029, 0
    %v3041 = vsel %vm2884, %v3030, 0
    %v3044 = vsel %vm2884, %v3031, 0
    %v3047 = vsel %vm2884, %v3032, 0
    %3049 = vmatprep.subr.bf16.mxu0 %v2723
    %3050 = vmatpush1.bf16.msra.mxu0 %v2722
    %3051 = vmatprep.subr.bf16.mxu0 %v2727
    %3052 = vmatpush1.bf16.msra.mxu0 %v2726
    %3053 = vmatprep.subr.bf16.mxu0 %v2731
    %3054 = vmatpush1.bf16.msra.mxu0 %v2730
    %3055 = vmatprep.subr.bf16.mxu0 %v2735
    %3056 = vmatpush1.bf16.msra.mxu0 %v2734
    %3057 = vmatprep.subr.bf16.mxu0 0
    %3058 = vmatpush1.bf16.msra.mxu0 0
    %3059 = vmatprep.subr.bf16.mxu0 0
    %3060 = vmatpush1.bf16.msra.mxu0 0
    %3061 = vmatprep.subr.bf16.mxu0 0
    %3062 = vmatpush1.bf16.msra.mxu0 0
    %3063 = vmatprep.subr.bf16.mxu0 0
    %3064 = vmatpush1.bf16.msra.mxu0 0
    %3065 = vmatprep.subr.bf16.mxu0 0
    %3066 = vmatpush1.bf16.msra.mxu0 0
    %3067 = vmatprep.subr.bf16.mxu0 0
    %3068 = vmatpush1.bf16.msra.mxu0 0
    %3069 = vmatprep.subr.bf16.mxu0 0
    %3070 = vmatpush1.bf16.msra.mxu0 0
    %3071 = vmatprep.subr.bf16.mxu0 0
    %3072 = vmatpush1.bf16.msra.mxu0 0
    %3073 = vmatprep.subr.bf16.mxu0 0
    %3074 = vmatpush1.bf16.msra.mxu0 0
    %3075 = vmatprep.subr.bf16.mxu0 0
    %3076 = vmatpush1.bf16.msra.mxu0 0
    %3077 = vmatprep.subr.bf16.mxu0 0
    %3078 = vmatpush1.bf16.msra.mxu0 0
    %3079 = vmatprep.subr.bf16.mxu0 0
    %3080 = vmatpush1.bf16.msra.mxu0 0
    %3081 = vmatprep.mubr.bf16.mxu0 0
    %3082 = vmatmul.mubr.bf16.gmra.mrb[0].mxu0 %v3038
    %v3083 = vpop.f32.mrb[0].mxu0
    %v3084 = vadd.f32 0.0, %v3083
    %v3085 = vpop.f32.mrb[0].mxu0
    %v3086 = vadd.f32 0.0, %v3085
    %v3087 = vpop.f32.mrb[0].mxu0
    %v3088 = vadd.f32 0.0, %v3087
    %v3089 = vpop.f32.mrb[0].mxu0
    %v3090 = vadd.f32 0.0, %v3089
    %3091 = vmatprep.mubr.bf16.mxu0 0
    %3092 = vmatmul.mubr.bf16.gmra.mrb[0].mxu0 %v3041
    %v3093 = vpop.f32.mrb[0].mxu0
    %v3094 = vadd.f32 0.0, %v3093
    %v3095 = vpop.f32.mrb[0].mxu0
    %v3096 = vadd.f32 0.0, %v3095
    %v3097 = vpop.f32.mrb[0].mxu0
    %v3098 = vadd.f32 0.0, %v3097
    %v3099 = vpop.f32.mrb[0].mxu0
    %v3100 = vadd.f32 0.0, %v3099
    %3101 = vmatprep.mubr.bf16.mxu0 0
    %3102 = vmatmul.mubr.bf16.gmra.mrb[0].mxu0 %v3044
    %v3103 = vpop.f32.mrb[0].mxu0
    %v3104 = vadd.f32 0.0, %v3103
    %v3105 = vpop.f32.mrb[0].mxu0
    %v3106 = vadd.f32 0.0, %v3105
    %v3107 = vpop.f32.mrb[0].mxu0
    %v3108 = vadd.f32 0.0, %v3107
    %v3109 = vpop.f32.mrb[0].mxu0
    %v3110 = vadd.f32 0.0, %v3109
    %3111 = vmatprep.mubr.bf16.mxu0 0
    %3112 = vmatmul.mubr.bf16.gmra.mrb[0].mxu0 %v3047
    %v3113 = vpop.f32.mrb[0].mxu0
    %v3114 = vadd.f32 0.0, %v3113
    %v3115 = vpop.f32.mrb[0].mxu0
    %v3116 = vadd.f32 0.0, %v3115
    %v3117 = vpop.f32.mrb[0].mxu0
    %v3118 = vadd.f32 0.0, %v3117
    %v3119 = vpop.f32.mrb[0].mxu0
    %v3120 = vadd.f32 0.0, %v3119
    %3121 = vdwg.mxu0
    %3122 = vmatprep.subr.bf16.mxu0 %v2725
    %3123 = vmatpush1.bf16.msra.mxu0 %v2724
    %3124 = vmatprep.subr.bf16.mxu0 %v2729
    %3125 = vmatpush1.bf16.msra.mxu0 %v2728
    %3126 = vmatprep.subr.bf16.mxu0 %v2733
    %3127 = vmatpush1.bf16.msra.mxu0 %v2732
    %3128 = vmatprep.subr.bf16.mxu0 %v2737
    %3129 = vmatpush1.bf16.msra.mxu0 %v2736
    %3130 = vmatprep.subr.bf16.mxu0 0
    %3131 = vmatpush1.bf16.msra.mxu0 0
    %3132 = vmatprep.subr.bf16.mxu0 0
    %3133 = vmatpush1.bf16.msra.mxu0 0
    %3134 = vmatprep.subr.bf16.mxu0 0
    %3135 = vmatpush1.bf16.msra.mxu0 0
    %3136 = vmatprep.subr.bf16.mxu0 0
    %3137 = vmatpush1.bf16.msra.mxu0 0
    %3138 = vmatprep.subr.bf16.mxu0 0
    %3139 = vmatpush1.bf16.msra.mxu0 0
    %3140 = vmatprep.subr.bf16.mxu0 0
    %3141 = vmatpush1.bf16.msra.mxu0 0
    %3142 = vmatprep.subr.bf16.mxu0 0
    %3143 = vmatpush1.bf16.msra.mxu0 0
    %3144 = vmatprep.subr.bf16.mxu0 0
    %3145 = vmatpush1.bf16.msra.mxu0 0
    %3146 = vmatprep.subr.bf16.mxu0 0
    %3147 = vmatpush1.bf16.msra.mxu0 0
    %3148 = vmatprep.subr.bf16.mxu0 0
    %3149 = vmatpush1.bf16.msra.mxu0 0
    %3150 = vmatprep.subr.bf16.mxu0 0
    %3151 = vmatpush1.bf16.msra.mxu0 0
    %3152 = vmatprep.subr.bf16.mxu0 0
    %3153 = vmatpush1.bf16.msra.mxu0 0
    %3154 = vmatprep.mubr.bf16.mxu0 0
    %3155 = vmatmul.mubr.bf16.gmra.mrb[0].mxu0 %v3038
    %v3156 = vpop.f32.mrb[0].mxu0
    %v3157 = vadd.f32 0.0, %v3156
    %v3158 = vpop.f32.mrb[0].mxu0
    %v3159 = vadd.f32 0.0, %v3158
    %v3160 = vpop.f32.mrb[0].mxu0
    %v3161 = vadd.f32 0.0, %v3160
    %v3162 = vpop.f32.mrb[0].mxu0
    %v3163 = vadd.f32 0.0, %v3162
    %3164 = vmatprep.mubr.bf16.mxu0 0
    %3165 = vmatmul.mubr.bf16.gmra.mrb[0].mxu0 %v3041
    %v3166 = vpop.f32.mrb[0].mxu0
    %v3167 = vadd.f32 0.0, %v3166
    %v3168 = vpop.f32.mrb[0].mxu0
    %v3169 = vadd.f32 0.0, %v3168
    %v3170 = vpop.f32.mrb[0].mxu0
    %v3171 = vadd.f32 0.0, %v3170
    %v3172 = vpop.f32.mrb[0].mxu0
    %v3173 = vadd.f32 0.0, %v3172
    %3174 = vmatprep.mubr.bf16.mxu0 0
    %3175 = vmatmul.mubr.bf16.gmra.mrb[0].mxu0 %v3044
    %v3176 = vpop.f32.mrb[0].mxu0
    %v3177 = vadd.f32 0.0, %v3176
    %v3178 = vpop.f32.mrb[0].mxu0
    %v3179 = vadd.f32 0.0, %v3178
    %v3180 = vpop.f32.mrb[0].mxu0
    %v3181 = vadd.f32 0.0, %v3180
    %v3182 = vpop.f32.mrb[0].mxu0
    %v3183 = vadd.f32 0.0, %v3182
    %3184 = vmatprep.mubr.bf16.mxu0 0
    %3185 = vmatmul.mubr.bf16.gmra.mrb[0].mxu0 %v3047
    %v3186 = vpop.f32.mrb[0].mxu0
    %v3187 = vadd.f32 0.0, %v3186
    %v3188 = vpop.f32.mrb[0].mxu0
    %v3189 = vadd.f32 0.0, %v3188
    %v3190 = vpop.f32.mrb[0].mxu0
    %v3191 = vadd.f32 0.0, %v3190
    %v3192 = vpop.f32.mrb[0].mxu0
    %v3193 = vadd.f32 0.0, %v3192
    %3194 = vdwg.mxu0
    %v3196 = vsel %vm2884, %v3033, 0
    %v3199 = vsel %vm2884, %v3034, 0
    %v3202 = vsel %vm2884, %v3035, 0
    %v3205 = vsel %vm2884, %v3036, 0
    %3207 = vmatprep.subr.bf16.mxu0 %v2739
    %3208 = vmatpush1.bf16.msra.mxu0 %v2738
    %3209 = vmatprep.subr.bf16.mxu0 %v2743
    %3210 = vmatpush1.bf16.msra.mxu0 %v2742
    %3211 = vmatprep.subr.bf16.mxu0 %v2747
    %3212 = vmatpush1.bf16.msra.mxu0 %v2746
    %3213 = vmatprep.subr.bf16.mxu0 %v2751
    %3214 = vmatpush1.bf16.msra.mxu0 %v2750
    %3215 = vmatprep.subr.bf16.mxu0 0
    %3216 = vmatpush1.bf16.msra.mxu0 0
    %3217 = vmatprep.subr.bf16.mxu0 0
    %3218 = vmatpush1.bf16.msra.mxu0 0
    %3219 = vmatprep.subr.bf16.mxu0 0
    %3220 = vmatpush1.bf16.msra.mxu0 0
    %3221 = vmatprep.subr.bf16.mxu0 0
    %3222 = vmatpush1.bf16.msra.mxu0 0
    %3223 = vmatprep.subr.bf16.mxu0 0
    %3224 = vmatpush1.bf16.msra.mxu0 0
    %3225 = vmatprep.subr.bf16.mxu0 0
    %3226 = vmatpush1.bf16.msra.mxu0 0
    %3227 = vmatprep.subr.bf16.mxu0 0
    %3228 = vmatpush1.bf16.msra.mxu0 0
    %3229 = vmatprep.subr.bf16.mxu0 0
    %3230 = vmatpush1.bf16.msra.mxu0 0
    %3231 = vmatprep.subr.bf16.mxu0 0
    %3232 = vmatpush1.bf16.msra.mxu0 0
    %3233 = vmatprep.subr.bf16.mxu0 0
    %3234 = vmatpush1.bf16.msra.mxu0 0
    %3235 = vmatprep.subr.bf16.mxu0 0
    %3236 = vmatpush1.bf16.msra.mxu0 0
    %3237 = vmatprep.subr.bf16.mxu0 0
    %3238 = vmatpush1.bf16.msra.mxu0 0
    %3239 = vmatprep.mubr.bf16.mxu0 0
    %3240 = vmatmul.mubr.bf16.gmra.mrb[0].mxu0 %v3196
    %v3241 = vpop.f32.mrb[0].mxu0
    %v3242 = vadd.f32 0.0, %v3241
    %v3243 = vpop.f32.mrb[0].mxu0
    %v3244 = vadd.f32 0.0, %v3243
    %v3245 = vpop.f32.mrb[0].mxu0
    %v3246 = vadd.f32 0.0, %v3245
    %v3247 = vpop.f32.mrb[0].mxu0
    %v3248 = vadd.f32 0.0, %v3247
    %3249 = vmatprep.mubr.bf16.mxu0 0
    %3250 = vmatmul.mubr.bf16.gmra.mrb[0].mxu0 %v3199
    %v3251 = vpop.f32.mrb[0].mxu0
    %v3252 = vadd.f32 0.0, %v3251
    %v3253 = vpop.f32.mrb[0].mxu0
    %v3254 = vadd.f32 0.0, %v3253
    %v3255 = vpop.f32.mrb[0].mxu0
    %v3256 = vadd.f32 0.0, %v3255
    %v3257 = vpop.f32.mrb[0].mxu0
    %v3258 = vadd.f32 0.0, %v3257
    %3259 = vmatprep.mubr.bf16.mxu0 0
    %3260 = vmatmul.mubr.bf16.gmra.mrb[0].mxu0 %v3202
    %v3261 = vpop.f32.mrb[0].mxu0
    %v3262 = vadd.f32 0.0, %v3261
    %v3263 = vpop.f32.mrb[0].mxu0
    %v3264 = vadd.f32 0.0, %v3263
    %v3265 = vpop.f32.mrb[0].mxu0
    %v3266 = vadd.f32 0.0, %v3265
    %v3267 = vpop.f32.mrb[0].mxu0
    %v3268 = vadd.f32 0.0, %v3267
    %3269 = vmatprep.mubr.bf16.mxu0 0
    %3270 = vmatmul.mubr.bf16.gmra.mrb[0].mxu0 %v3205
    %v3271 = vpop.f32.mrb[0].mxu0
    %v3272 = vadd.f32 0.0, %v3271
    %v3273 = vpop.f32.mrb[0].mxu0
    %v3274 = vadd.f32 0.0, %v3273
    %v3275 = vpop.f32.mrb[0].mxu0
    %v3276 = vadd.f32 0.0, %v3275
    %v3277 = vpop.f32.mrb[0].mxu0
    %v3278 = vadd.f32 0.0, %v3277
    %3279 = vdwg.mxu0
    %3280 = vmatprep.subr.bf16.mxu0 %v2741
    %3281 = vmatpush1.bf16.msra.mxu0 %v2740
    %3282 = vmatprep.subr.bf16.mxu0 %v2745
    %3283 = vmatpush1.bf16.msra.mxu0 %v2744
    %3284 = vmatprep.subr.bf16.mxu0 %v2749
    %3285 = vmatpush1.bf16.msra.mxu0 %v2748
    %3286 = vmatprep.subr.bf16.mxu0 %v2753
    %3287 = vmatpush1.bf16.msra.mxu0 %v2752
    %3288 = vmatprep.subr.bf16.mxu0 0
    %3289 = vmatpush1.bf16.msra.mxu0 0
    %3290 = vmatprep.subr.bf16.mxu0 0
    %3291 = vmatpush1.bf16.msra.mxu0 0
    %3292 = vmatprep.subr.bf16.mxu0 0
    %3293 = vmatpush1.bf16.msra.mxu0 0
    %3294 = vmatprep.subr.bf16.mxu0 0
    %3295 = vmatpush1.bf16.msra.mxu0 0
    %3296 = vmatprep.subr.bf16.mxu0 0
    %3297 = vmatpush1.bf16.msra.mxu0 0
    %3298 = vmatprep.subr.bf16.mxu0 0
    %3299 = vmatpush1.bf16.msra.mxu0 0
    %3300 = vmatprep.subr.bf16.mxu0 0
    %3301 = vmatpush1.bf16.msra.mxu0 0
    %3302 = vmatprep.subr.bf16.mxu0 0
    %3303 = vmatpush1.bf16.msra.mxu0 0
    %3304 = vmatprep.subr.bf16.mxu0 0
    %3305 = vmatpush1.bf16.msra.mxu0 0
    %3306 = vmatprep.subr.bf16.mxu0 0
    %3307 = vmatpush1.bf16.msra.mxu0 0
    %3308 = vmatprep.subr.bf16.mxu0 0
    %3309 = vmatpush1.bf16.msra.mxu0 0
    %3310 = vmatprep.subr.bf16.mxu0 0
    %3311 = vmatpush1.bf16.msra.mxu0 0
    %3312 = vmatprep.mubr.bf16.mxu0 0
    %3313 = vmatmul.mubr.bf16.gmra.mrb[0].mxu0 %v3196
    %v3314 = vpop.f32.mrb[0].mxu0
    %v3315 = vadd.f32 0.0, %v3314
    %v3316 = vpop.f32.mrb[0].mxu0
    %v3317 = vadd.f32 0.0, %v3316
    %v3318 = vpop.f32.mrb[0].mxu0
    %v3319 = vadd.f32 0.0, %v3318
    %v3320 = vpop.f32.mrb[0].mxu0
    %v3321 = vadd.f32 0.0, %v3320
    %3322 = vmatprep.mubr.bf16.mxu0 0
    %3323 = vmatmul.mubr.bf16.gmra.mrb[0].mxu0 %v3199
    %v3324 = vpop.f32.mrb[0].mxu0
    %v3325 = vadd.f32 0.0, %v3324
    %v3326 = vpop.f32.mrb[0].mxu0
    %v3327 = vadd.f32 0.0, %v3326
    %v3328 = vpop.f32.mrb[0].mxu0
    %v3329 = vadd.f32 0.0, %v3328
    %v3330 = vpop.f32.mrb[0].mxu0
    %v3331 = vadd.f32 0.0, %v3330
    %3332 = vmatprep.mubr.bf16.mxu0 0
    %3333 = vmatmul.mubr.bf16.gmra.mrb[0].mxu0 %v3202
    %v3334 = vpop.f32.mrb[0].mxu0
    %v3335 = vadd.f32 0.0, %v3334
    %v3336 = vpop.f32.mrb[0].mxu0
    %v3337 = vadd.f32 0.0, %v3336
    %v3338 = vpop.f32.mrb[0].mxu0
    %v3339 = vadd.f32 0.0, %v3338
    %v3340 = vpop.f32.mrb[0].mxu0
    %v3341 = vadd.f32 0.0, %v3340
    %3342 = vmatprep.mubr.bf16.mxu0 0
    %3343 = vmatmul.mubr.bf16.gmra.mrb[0].mxu0 %v3205
    %v3344 = vpop.f32.mrb[0].mxu0
    %v3345 = vadd.f32 0.0, %v3344
    %v3346 = vpop.f32.mrb[0].mxu0
    %v3347 = vadd.f32 0.0, %v3346
    %v3348 = vpop.f32.mrb[0].mxu0
    %v3349 = vadd.f32 0.0, %v3348
    %v3350 = vpop.f32.mrb[0].mxu0
    %v3351 = vadd.f32 0.0, %v3350
    %3352 = vdwg.mxu0
    %v3353 = vrcp.pop %v2983
    %v3354 = vrcp.pop %v2986
    %v3355 = vrcp.pop %v2989
    %v3356 = vrcp.pop %v2992
    %v3357 = vrcp.pop %v2995
    %v3358 = vrcp.pop %v2998
    %v3359 = vrcp.pop %v3001
    %v3360 = vrcp.pop %v3004
    %v3361 = vrcp.pop %v3007
    %v3362 = vrcp.pop %v3010
    %v3363 = vrcp.pop %v3013
    %v3364 = vrcp.pop %v3016
    %v3365 = vrcp.pop %v3019
    %v3366 = vrcp.pop %v3022
    %v3367 = vrcp.pop %v3025
    %v3368 = vrcp.pop %v3028
    %v3369 = vmul.f32 %v3084, %v3353
    %v3370 = vmul.f32 %v3086, %v3353
    %v3371 = vmul.f32 %v3157, %v3353
    %v3372 = vmul.f32 %v3159, %v3353
    %v3373 = vmul.f32 %v3088, %v3354
    %v3374 = vmul.f32 %v3090, %v3354
    %v3375 = vmul.f32 %v3161, %v3354
    %v3376 = vmul.f32 %v3163, %v3354
    %v3377 = vmul.f32 %v3094, %v3355
    %v3378 = vmul.f32 %v3096, %v3355
    %v3379 = vmul.f32 %v3167, %v3355
    %v3380 = vmul.f32 %v3169, %v3355
    %v3381 = vmul.f32 %v3098, %v3356
    %v3382 = vmul.f32 %v3100, %v3356
    %v3383 = vmul.f32 %v3171, %v3356
    %v3384 = vmul.f32 %v3173, %v3356
    %v3385 = vmul.f32 %v3104, %v3357
    %v3386 = vmul.f32 %v3106, %v3357
    %v3387 = vmul.f32 %v3177, %v3357
    %v3388 = vmul.f32 %v3179, %v3357
    %v3389 = vmul.f32 %v3108, %v3358
    %v3390 = vmul.f32 %v3110, %v3358
    %v3391 = vmul.f32 %v3181, %v3358
    %v3392 = vmul.f32 %v3183, %v3358
    %v3393 = vmul.f32 %v3114, %v3359
    %v3394 = vmul.f32 %v3116, %v3359
    %v3395 = vmul.f32 %v3187, %v3359
    %v3396 = vmul.f32 %v3189, %v3359
    %v3397 = vmul.f32 %v3118, %v3360
    %v3398 = vmul.f32 %v3120, %v3360
    %v3399 = vmul.f32 %v3191, %v3360
    %v3400 = vmul.f32 %v3193, %v3360
    %v3401 = vmul.f32 %v3242, %v3361
    %v3402 = vmul.f32 %v3244, %v3361
    %v3403 = vmul.f32 %v3315, %v3361
    %v3404 = vmul.f32 %v3317, %v3361
    %v3405 = vmul.f32 %v3246, %v3362
    %v3406 = vmul.f32 %v3248, %v3362
    %v3407 = vmul.f32 %v3319, %v3362
    %v3408 = vmul.f32 %v3321, %v3362
    %v3409 = vmul.f32 %v3252, %v3363
    %v3410 = vmul.f32 %v3254, %v3363
    %v3411 = vmul.f32 %v3325, %v3363
    %v3412 = vmul.f32 %v3327, %v3363
    %v3413 = vmul.f32 %v3256, %v3364
    %v3414 = vmul.f32 %v3258, %v3364
    %v3415 = vmul.f32 %v3329, %v3364
    %v3416 = vmul.f32 %v3331, %v3364
    %v3417 = vmul.f32 %v3262, %v3365
    %v3418 = vmul.f32 %v3264, %v3365
    %v3419 = vmul.f32 %v3335, %v3365
    %v3420 = vmul.f32 %v3337, %v3365
    %v3421 = vmul.f32 %v3266, %v3366
    %v3422 = vmul.f32 %v3268, %v3366
    %v3423 = vmul.f32 %v3339, %v3366
    %v3424 = vmul.f32 %v3341, %v3366
    %v3425 = vmul.f32 %v3272, %v3367
    %v3426 = vmul.f32 %v3274, %v3367
    %v3427 = vmul.f32 %v3345, %v3367
    %v3428 = vmul.f32 %v3347, %v3367
    %v3429 = vmul.f32 %v3276, %v3368
    %v3430 = vmul.f32 %v3278, %v3368
    %v3431 = vmul.f32 %v3349, %v3368
    %v3432 = vmul.f32 %v3351, %v3368
    %3433 = vst [vmem:[#allocation2] sm:$0xff] %v3369
    %3434 = vst [vmem:[#allocation2 + $0x8] sm:$0xff] %v3370
    %3435 = vst [vmem:[#allocation2 + $0x10] sm:$0xff] %v3371
    %3436 = vst [vmem:[#allocation2 + $0x18] sm:$0xff] %v3372
    %3437 = vst [vmem:[#allocation2 + $0x20] sm:$0xff] %v3373
    %3438 = vst [vmem:[#allocation2 + $0x28] sm:$0xff] %v3374
    %3439 = vst [vmem:[#allocation2 + $0x30] sm:$0xff] %v3375
    %3440 = vst [vmem:[#allocation2 + $0x38] sm:$0xff] %v3376
    %3441 = vst [vmem:[#allocation2 + $0x40] sm:$0xff] %v3377
    %3442 = vst [vmem:[#allocation2 + $0x48] sm:$0xff] %v3378
    %3443 = vst [vmem:[#allocation2 + $0x50] sm:$0xff] %v3379
    %3444 = vst [vmem:[#allocation2 + $0x58] sm:$0xff] %v3380
    %3445 = vst [vmem:[#allocation2 + $0x60] sm:$0xff] %v3381
    %3446 = vst [vmem:[#allocation2 + $0x68] sm:$0xff] %v3382
    %3447 = vst [vmem:[#allocation2 + $0x70] sm:$0xff] %v3383
    %3448 = vst [vmem:[#allocation2 + $0x78] sm:$0xff] %v3384
    %3449 = vst [vmem:[#allocation2 + $0x80] sm:$0xff] %v3385
    %3450 = vst [vmem:[#allocation2 + $0x88] sm:$0xff] %v3386
    %3451 = vst [vmem:[#allocation2 + $0x90] sm:$0xff] %v3387
    %3452 = vst [vmem:[#allocation2 + $0x98] sm:$0xff] %v3388
    %3453 = vst [vmem:[#allocation2 + $0xa0] sm:$0xff] %v3389
    %3454 = vst [vmem:[#allocation2 + $0xa8] sm:$0xff] %v3390
    %3455 = vst [vmem:[#allocation2 + $0xb0] sm:$0xff] %v3391
    %3456 = vst [vmem:[#allocation2 + $0xb8] sm:$0xff] %v3392
    %3457 = vst [vmem:[#allocation2 + $0xc0] sm:$0xff] %v3393
    %3458 = vst [vmem:[#allocation2 + $0xc8] sm:$0xff] %v3394
    %3459 = vst [vmem:[#allocation2 + $0xd0] sm:$0xff] %v3395
    %3460 = vst [vmem:[#allocation2 + $0xd8] sm:$0xff] %v3396
    %3461 = vst [vmem:[#allocation2 + $0xe0] sm:$0xff] %v3397
    %3462 = vst [vmem:[#allocation2 + $0xe8] sm:$0xff] %v3398
    %3463 = vst [vmem:[#allocation2 + $0xf0] sm:$0xff] %v3399
    %3464 = vst [vmem:[#allocation2 + $0xf8] sm:$0xff] %v3400
    %3465 = vst [vmem:[#allocation2 + $0x100] sm:$0xff] %v3401
    %3466 = vst [vmem:[#allocation2 + $0x108] sm:$0xff] %v3402
    %3467 = vst [vmem:[#allocation2 + $0x110] sm:$0xff] %v3403
    %3468 = vst [vmem:[#allocation2 + $0x118] sm:$0xff] %v3404
    %3469 = vst [vmem:[#allocation2 + $0x120] sm:$0xff] %v3405
    %3470 = vst [vmem:[#allocation2 + $0x128] sm:$0xff] %v3406
    %3471 = vst [vmem:[#allocation2 + $0x130] sm:$0xff] %v3407
    %3472 = vst [vmem:[#allocation2 + $0x138] sm:$0xff] %v3408
    %3473 = vst [vmem:[#allocation2 + $0x140] sm:$0xff] %v3409
    %3474 = vst [vmem:[#allocation2 + $0x148] sm:$0xff] %v3410
    %3475 = vst [vmem:[#allocation2 + $0x150] sm:$0xff] %v3411
    %3476 = vst [vmem:[#allocation2 + $0x158] sm:$0xff] %v3412
    %3477 = vst [vmem:[#allocation2 + $0x160] sm:$0xff] %v3413
    %3478 = vst [vmem:[#allocation2 + $0x168] sm:$0xff] %v3414
    %3479 = vst [vmem:[#allocation2 + $0x170] sm:$0xff] %v3415
    %3480 = vst [vmem:[#allocation2 + $0x178] sm:$0xff] %v3416
    %3481 = vst [vmem:[#allocation2 + $0x180] sm:$0xff] %v3417
    %3482 = vst [vmem:[#allocation2 + $0x188] sm:$0xff] %v3418
    %3483 = vst [vmem:[#allocation2 + $0x190] sm:$0xff] %v3419
    %3484 = vst [vmem:[#allocation2 + $0x198] sm:$0xff] %v3420
    %3485 = vst [vmem:[#allocation2 + $0x1a0] sm:$0xff] %v3421
    %3486 = vst [vmem:[#allocation2 + $0x1a8] sm:$0xff] %v3422
    %3487 = vst [vmem:[#allocation2 + $0x1b0] sm:$0xff] %v3423
    %3488 = vst [vmem:[#allocation2 + $0x1b8] sm:$0xff] %v3424
    %3489 = vst [vmem:[#allocation2 + $0x1c0] sm:$0xff] %v3425
    %3490 = vst [vmem:[#allocation2 + $0x1c8] sm:$0xff] %v3426
    %3491 = vst [vmem:[#allocation2 + $0x1d0] sm:$0xff] %v3427
    %3492 = vst [vmem:[#allocation2 + $0x1d8] sm:$0xff] %v3428
    %3493 = vst [vmem:[#allocation2 + $0x1e0] sm:$0xff] %v3429
    %3494 = vst [vmem:[#allocation2 + $0x1e8] sm:$0xff] %v3430
    %3495 = vst [vmem:[#allocation2 + $0x1f0] sm:$0xff] %v3431
    %3496 = vst [vmem:[#allocation2 + $0x1f8] sm:$0xff] %v3432
    // Predicated region
    $region14: #{self_attention_pallas.1} parent=1 // pred_check
      _
    $region15: #{self_attention_pallas.1} parent=1 // pred_check_branch
      %3498 = sbr.rel (0) target = $region17
    $region16: #{self_attention_pallas.1} parent=1 // pred_region
      %s3500 = ssub.s32 8192, 8192
      %3501 = vsyncadd [#allocation3], %s3500
      %s3502 = sshll.u32 [#allocation2], 4
      %s3503 = int_to_ptr.vmem [resolvable:$true] %s3502
      %3508 = dma.vmem_to_hbm [thread:$0]  %s3503, 8192, %s3, [#allocation3], 512, 512, 32
    $region17: #{self_attention_pallas.1} parent=1 // pred_fallthru
      _
    // Predicated region
    $region18: #{self_attention_pallas.1} parent=1 // pred_check
      _
    $region19: #{self_attention_pallas.1} parent=1 // pred_check_branch
      %3510 = sbr.rel (0) target = $region21
    $region20: #{self_attention_pallas.1} parent=1 // pred_region
      %3511 = dma.done [#allocation3], 8192
    $region21: #{self_attention_pallas.1} parent=1 // pred_fallthru
      _
    %3512 = vsyncpa [#allocation3], 1

</llo_original>
